<compile_context>
chip_gen: v5e
topology: v5e:2x2
jax: 0.10.0
libtpu: 0.0.40
codegen_flags: <defaults>
</compile_context>

<pallas_src>
import jax
import jax.numpy as jnp
from jax import lax
from jax.experimental import pallas as pl
from jax.experimental.pallas import tpu as pltpu

INPUT_SIZE = 28
IN_PAD = 32        # feature dim padded to a sublane multiple
HIDDEN = 64
OUT_DIM = 10
OUT_PAD = 128      # lane-dense padded output width
MAX_BATCH_TILE = 256


def _lstm_head_kernel(x_ref, wih_ref, whh_ref, b_ref, wout_ref, bout_ref,
                      out_ref, precomp_ref):
    T, Bt, _ = x_ref.shape
    H = whh_ref.shape[0]

    wih = wih_ref[...]        # (IN_PAD, 4H) bf16
    whh = whh_ref[...]        # (H, 4H)      bf16
    bias = b_ref[...]         # (1, 4H)      f32, (b_ih + b_hh) folded

    # (1) Input projection of every timestep, staged through VMEM scratch.
    #     Independent of the recurrence -> off the serial critical path.
    for t in range(T):        # static
        precomp_ref[t] = (
            jnp.dot(x_ref[t].astype(jnp.bfloat16), wih,
                    preferred_element_type=jnp.float32) + bias)

    # (2) Recurrence: only h @ W_hh^T + gate math on the serial path.
    def step(t, carry):
        h, c = carry
        gates = precomp_ref[t] + jnp.dot(
            h.astype(jnp.bfloat16), whh, preferred_element_type=jnp.float32)
        # Gate order (i, f, o, g): one sigmoid over 3H cols, one tanh over H.
        sig = jax.nn.sigmoid(gates[:, :3 * H])
        g_g = jnp.tanh(gates[:, 3 * H:])
        i_g = sig[:, 0 * H:1 * H]
        f_g = sig[:, 1 * H:2 * H]
        o_g = sig[:, 2 * H:3 * H]
        c_new = f_g * c + i_g * g_g
        h_new = o_g * jnp.tanh(c_new)
        return (h_new, c_new)

    h0 = jnp.zeros((Bt, H), jnp.float32)
    c0 = jnp.zeros((Bt, H), jnp.float32)
    h, _ = lax.fori_loop(0, T, step, (h0, c0), unroll=True)

    # (3) Classifier head on the last hidden state; lane-dense (Bt, 128) store.
    out_ref[...] = (jnp.dot(h.astype(jnp.bfloat16), wout_ref[...],
                            preferred_element_type=jnp.float32)
                    + bout_ref[...]).astype(out_ref.dtype)


def _reorder_gates(w):
    """Reorder the 4H gate axis from PyTorch (i, f, g, o) to (i, f, o, g)."""
    i, f, g, o = jnp.split(w, 4, axis=-1)
    return jnp.concatenate([i, f, o, g], axis=-1)


def prepare_params(params):
    """One-time weight prep (hoisted out of the per-call path)."""
    w_ih, w_hh, b_ih, b_hh, w_out, b_out = params
    H = HIDDEN
    wih_t = _reorder_gates(w_ih.T)                               # (I, 4H)
    wih_t = jnp.pad(wih_t, ((0, IN_PAD - INPUT_SIZE), (0, 0)))   # (IN_PAD, 4H)
    wih_t = wih_t.astype(jnp.bfloat16)
    whh_t = _reorder_gates(w_hh.T).astype(jnp.bfloat16)          # (H, 4H)
    bias = _reorder_gates((b_ih + b_hh).reshape(1, 4 * H))       # (1, 4H) f32
    wout_t = (jnp.zeros((H, OUT_PAD), jnp.bfloat16)
              .at[:, :OUT_DIM].set(w_out.T.astype(jnp.bfloat16)))
    bout = jnp.zeros((1, OUT_PAD), jnp.float32).at[:, :OUT_DIM].set(b_out)
    return (wih_t, whh_t, bias, wout_t, bout)


def rnn_forward(x, prepped):
    """x: (B, T, INPUT_SIZE) float32 -> (B, 10) float32."""
    wih_t, whh_t, bias, wout_t, bout = prepped
    B, T, I = x.shape

    # Pad batch to a multiple of 8 (f32 sublane height) and pick a batch tile.
    Bp = max(8, ((B + 7) // 8) * 8)
    if Bp <= MAX_BATCH_TILE:
        b_tile = Bp
    else:
        b_tile = MAX_BATCH_TILE
        Bp = ((Bp + b_tile - 1) // b_tile) * b_tile
    n_tiles = Bp // b_tile

    # Pad batch + feature dim, then go timestep-major: (T, Bp, IN_PAD).
    x_p = jnp.pad(x, ((0, Bp - B), (0, 0), (0, IN_PAD - I)))
    x_tmaj = jnp.transpose(x_p, (1, 0, 2))

    out_padded = pl.pallas_call(
        _lstm_head_kernel,
        out_shape=jax.ShapeDtypeStruct((Bp, OUT_PAD), jnp.float32),
        grid_spec=pltpu.PrefetchScalarGridSpec(
            num_scalar_prefetch=0,
            grid=(n_tiles,),
            in_specs=[
                pl.BlockSpec((T, b_tile, IN_PAD), lambda i: (0, i, 0)),
                pl.BlockSpec(wih_t.shape, lambda i: (0, 0)),
                pl.BlockSpec(whh_t.shape, lambda i: (0, 0)),
                pl.BlockSpec(bias.shape, lambda i: (0, 0)),
                pl.BlockSpec(wout_t.shape, lambda i: (0, 0)),
                pl.BlockSpec(bout.shape, lambda i: (0, 0)),
            ],
            out_specs=pl.BlockSpec((b_tile, OUT_PAD), lambda i: (i, 0)),
            scratch_shapes=[pltpu.VMEM((T, b_tile, 4 * HIDDEN), jnp.float32)],
        ),
        compiler_params=pltpu.CompilerParams(
            dimension_semantics=("parallel",)),
    )(x_tmaj, wih_t, whh_t, bias, wout_t, bout)

    return out_padded[:B, :OUT_DIM]


def rnn_reference(x, params):
    """Pure-JAX f32 reference matching PyTorch nn.LSTM + nn.Linear semantics."""
    w_ih, w_hh, b_ih, b_hh, w_out, b_out = params
    B, T, I = x.shape
    H = HIDDEN

    def step(carry, x_t):
        h, c = carry
        gates = x_t @ w_ih.T + b_ih + h @ w_hh.T + b_hh
        i_g = jax.nn.sigmoid(gates[:, 0 * H:1 * H])
        f_g = jax.nn.sigmoid(gates[:, 1 * H:2 * H])
        g_g = jnp.tanh(gates[:, 2 * H:3 * H])
        o_g = jax.nn.sigmoid(gates[:, 3 * H:4 * H])
        c_new = f_g * c + i_g * g_g
        h_new = o_g * jnp.tanh(c_new)
        return (h_new, c_new), h_new

    h0 = jnp.zeros((B, H), jnp.float32)
    c0 = jnp.zeros((B, H), jnp.float32)
    (h_T, _), _ = lax.scan(step, (h0, c0), jnp.transpose(x, (1, 0, 2)))
    return h_T @ w_out.T + b_out


def init_params(key):
    """Deterministic init, shapes as in PyTorch nn.LSTM / nn.Linear defaults."""
    H, I = HIDDEN, INPUT_SIZE
    k = jax.random.split(key, 6)
    bound = 1.0 / jnp.sqrt(jnp.float32(H))
    w_ih = jax.random.uniform(k[0], (4 * H, I), jnp.float32, -bound, bound)
    w_hh = jax.random.uniform(k[1], (4 * H, H), jnp.float32, -bound, bound)
    b_ih = jax.random.uniform(k[2], (4 * H,), jnp.float32, -bound, bound)
    b_hh = jax.random.uniform(k[3], (4 * H,), jnp.float32, -bound, bound)
    w_out = jax.random.uniform(k[4], (OUT_DIM, H), jnp.float32, -bound, bound)
    b_out = jax.random.uniform(k[5], (OUT_DIM,), jnp.float32, -bound, bound)
    return (w_ih, w_hh, b_ih, b_hh, w_out, b_out)


if __name__ == "__main__":
    key = jax.random.PRNGKey(0)
    pkey, xkey = jax.random.split(key)
    params = init_params(pkey)
    prepped = prepare_params(params)   # one-time weight prep

    B, T = 2, 8
    x = jax.random.normal(xkey, (B, T, INPUT_SIZE), jnp.float32)

    fwd = jax.jit(rnn_forward)
    out = jax.block_until_ready(fwd(x, prepped))
    ref = jax.block_until_ready(rnn_reference(x, params))

    assert out.shape == (B, OUT_DIM)
    # bf16 MXU operands (f32 accumulation) -> relaxed tolerance vs f32 reference.
    assert jnp.allclose(out, ref, rtol=2e-2, atol=2e-2), "mismatch vs reference"

    print("KERNEL_OK")
</pallas_src>

<mosaic_0001>
module attributes {stable_mosaic.version = 11 : i64} {
  func.func @_lstm_head_kernel(%arg0: i32, %arg1: memref<8x8x32xf32, #tpu.memory_space<vmem>>, %arg2: memref<32x256xbf16, #tpu.memory_space<vmem>>, %arg3: memref<64x256xbf16, #tpu.memory_space<vmem>>, %arg4: memref<1x256xf32, #tpu.memory_space<vmem>>, %arg5: memref<64x128xbf16, #tpu.memory_space<vmem>>, %arg6: memref<1x128xf32, #tpu.memory_space<vmem>>, %arg7: memref<8x128xf32, #tpu.memory_space<vmem>>, %arg8: memref<8x8x256xf32, #tpu.memory_space<vmem>>) attributes {dimension_semantics = [#tpu.dimension_semantics<parallel>], iteration_bounds = array<i64: 1>, scalar_prefetch = 0 : i64, scratch_operands = 1 : i64, tpu.core_type = #tpu.core_type<tc>, window_params = [{transform_indices = @transform_0, window_bounds = array<i64: 8, 8, 32>}, {pipeline_mode = #tpu.pipeline_mode<synchronous>, transform_indices = @transform_1, window_bounds = array<i64: 32, 256>}, {pipeline_mode = #tpu.pipeline_mode<synchronous>, transform_indices = @transform_2, window_bounds = array<i64: 64, 256>}, {pipeline_mode = #tpu.pipeline_mode<synchronous>, transform_indices = @transform_3, window_bounds = array<i64: 1, 256>}, {pipeline_mode = #tpu.pipeline_mode<synchronous>, transform_indices = @transform_4, window_bounds = array<i64: 64, 128>}, {pipeline_mode = #tpu.pipeline_mode<synchronous>, transform_indices = @transform_5, window_bounds = array<i64: 1, 128>}, {transform_indices = @transform_6, window_bounds = array<i64: 8, 128>}]} {
    %c0 = arith.constant 0 : index
    %c0_0 = arith.constant 0 : index
    %0 = vector.load %arg2[%c0, %c0_0] : memref<32x256xbf16, #tpu.memory_space<vmem>>, vector<32x256xbf16>
    %c0_1 = arith.constant 0 : index
    %c0_2 = arith.constant 0 : index
    %1 = vector.load %arg3[%c0_1, %c0_2] : memref<64x256xbf16, #tpu.memory_space<vmem>>, vector<64x256xbf16>
    %c0_3 = arith.constant 0 : index
    %c0_4 = arith.constant 0 : index
    %2 = vector.load %arg4[%c0_3, %c0_4] : memref<1x256xf32, #tpu.memory_space<vmem>>, vector<1x256xf32>
    %c0_5 = arith.constant 0 : index
    %c0_6 = arith.constant 0 : index
    %c0_7 = arith.constant 0 : index
    %3 = vector.load %arg1[%c0_5, %c0_6, %c0_7] : memref<8x8x32xf32, #tpu.memory_space<vmem>>, vector<1x8x32xf32>
    %4 = vector.shape_cast %3 : vector<1x8x32xf32> to vector<8x32xf32>
    %5 = arith.truncf %4 : vector<8x32xf32> to vector<8x32xbf16>
    %cst = arith.constant dense<0.000000e+00> : vector<8x256xf32>
    %6 = tpu.matmul %5, %0, %cst {dimension_numbers = #tpu.dot_dimension_numbers<[1], [0], [0], [1], [0, 0, 1, 1], [], []>} : vector<8x32xbf16>, vector<32x256xbf16>, vector<8x256xf32> -> vector<8x256xf32>
    %7 = vector.broadcast %2 : vector<1x256xf32> to vector<8x256xf32>
    %8 = arith.addf %6, %7 : vector<8x256xf32>
    %c0_8 = arith.constant 0 : index
    %c0_9 = arith.constant 0 : index
    %c0_10 = arith.constant 0 : index
    %9 = vector.load %arg8[%c0_8, %c0_9, %c0_10] : memref<8x8x256xf32, #tpu.memory_space<vmem>>, vector<1x8x256xf32>
    %10 = vector.shape_cast %9 : vector<1x8x256xf32> to vector<8x256xf32>
    %11 = vector.shape_cast %8 : vector<8x256xf32> to vector<1x8x256xf32>
    tpu.vector_store %arg8[%c0_8, %c0_9, %c0_10], %11 {strides = array<i32>} : memref<8x8x256xf32, #tpu.memory_space<vmem>>, vector<1x8x256xf32>,
    %c1 = arith.constant 1 : index
    %c0_11 = arith.constant 0 : index
    %c0_12 = arith.constant 0 : index
    %12 = vector.load %arg1[%c1, %c0_11, %c0_12] : memref<8x8x32xf32, #tpu.memory_space<vmem>>, vector<1x8x32xf32>
    %13 = vector.shape_cast %12 : vector<1x8x32xf32> to vector<8x32xf32>
    %14 = arith.truncf %13 : vector<8x32xf32> to vector<8x32xbf16>
    %cst_13 = arith.constant dense<0.000000e+00> : vector<8x256xf32>
    %15 = tpu.matmul %14, %0, %cst_13 {dimension_numbers = #tpu.dot_dimension_numbers<[1], [0], [0], [1], [0, 0, 1, 1], [], []>} : vector<8x32xbf16>, vector<32x256xbf16>, vector<8x256xf32> -> vector<8x256xf32>
    %16 = vector.broadcast %2 : vector<1x256xf32> to vector<8x256xf32>
    %17 = arith.addf %15, %16 : vector<8x256xf32>
    %c1_14 = arith.constant 1 : index
    %c0_15 = arith.constant 0 : index
    %c0_16 = arith.constant 0 : index
    %18 = vector.load %arg8[%c1_14, %c0_15, %c0_16] : memref<8x8x256xf32, #tpu.memory_space<vmem>>, vector<1x8x256xf32>
    %19 = vector.shape_cast %18 : vector<1x8x256xf32> to vector<8x256xf32>
    %20 = vector.shape_cast %17 : vector<8x256xf32> to vector<1x8x256xf32>
    tpu.vector_store %arg8[%c1_14, %c0_15, %c0_16], %20 {strides = array<i32>} : memref<8x8x256xf32, #tpu.memory_space<vmem>>, vector<1x8x256xf32>,
    %c2 = arith.constant 2 : index
    %c0_17 = arith.constant 0 : index
    %c0_18 = arith.constant 0 : index
    %21 = vector.load %arg1[%c2, %c0_17, %c0_18] : memref<8x8x32xf32, #tpu.memory_space<vmem>>, vector<1x8x32xf32>
    %22 = vector.shape_cast %21 : vector<1x8x32xf32> to vector<8x32xf32>
    %23 = arith.truncf %22 : vector<8x32xf32> to vector<8x32xbf16>
    %cst_19 = arith.constant dense<0.000000e+00> : vector<8x256xf32>
    %24 = tpu.matmul %23, %0, %cst_19 {dimension_numbers = #tpu.dot_dimension_numbers<[1], [0], [0], [1], [0, 0, 1, 1], [], []>} : vector<8x32xbf16>, vector<32x256xbf16>, vector<8x256xf32> -> vector<8x256xf32>
    %25 = vector.broadcast %2 : vector<1x256xf32> to vector<8x256xf32>
    %26 = arith.addf %24, %25 : vector<8x256xf32>
    %c2_20 = arith.constant 2 : index
    %c0_21 = arith.constant 0 : index
    %c0_22 = arith.constant 0 : index
    %27 = vector.load %arg8[%c2_20, %c0_21, %c0_22] : memref<8x8x256xf32, #tpu.memory_space<vmem>>, vector<1x8x256xf32>
    %28 = vector.shape_cast %27 : vector<1x8x256xf32> to vector<8x256xf32>
    %29 = vector.shape_cast %26 : vector<8x256xf32> to vector<1x8x256xf32>
    tpu.vector_store %arg8[%c2_20, %c0_21, %c0_22], %29 {strides = array<i32>} : memref<8x8x256xf32, #tpu.memory_space<vmem>>, vector<1x8x256xf32>,
    %c3 = arith.constant 3 : index
    %c0_23 = arith.constant 0 : index
    %c0_24 = arith.constant 0 : index
    %30 = vector.load %arg1[%c3, %c0_23, %c0_24] : memref<8x8x32xf32, #tpu.memory_space<vmem>>, vector<1x8x32xf32>
    %31 = vector.shape_cast %30 : vector<1x8x32xf32> to vector<8x32xf32>
    %32 = arith.truncf %31 : vector<8x32xf32> to vector<8x32xbf16>
    %cst_25 = arith.constant dense<0.000000e+00> : vector<8x256xf32>
    %33 = tpu.matmul %32, %0, %cst_25 {dimension_numbers = #tpu.dot_dimension_numbers<[1], [0], [0], [1], [0, 0, 1, 1], [], []>} : vector<8x32xbf16>, vector<32x256xbf16>, vector<8x256xf32> -> vector<8x256xf32>
    %34 = vector.broadcast %2 : vector<1x256xf32> to vector<8x256xf32>
    %35 = arith.addf %33, %34 : vector<8x256xf32>
    %c3_26 = arith.constant 3 : index
    %c0_27 = arith.constant 0 : index
    %c0_28 = arith.constant 0 : index
    %36 = vector.load %arg8[%c3_26, %c0_27, %c0_28] : memref<8x8x256xf32, #tpu.memory_space<vmem>>, vector<1x8x256xf32>
    %37 = vector.shape_cast %36 : vector<1x8x256xf32> to vector<8x256xf32>
    %38 = vector.shape_cast %35 : vector<8x256xf32> to vector<1x8x256xf32>
    tpu.vector_store %arg8[%c3_26, %c0_27, %c0_28], %38 {strides = array<i32>} : memref<8x8x256xf32, #tpu.memory_space<vmem>>, vector<1x8x256xf32>,
    %c4 = arith.constant 4 : index
    %c0_29 = arith.constant 0 : index
    %c0_30 = arith.constant 0 : index
    %39 = vector.load %arg1[%c4, %c0_29, %c0_30] : memref<8x8x32xf32, #tpu.memory_space<vmem>>, vector<1x8x32xf32>
    %40 = vector.shape_cast %39 : vector<1x8x32xf32> to vector<8x32xf32>
    %41 = arith.truncf %40 : vector<8x32xf32> to vector<8x32xbf16>
    %cst_31 = arith.constant dense<0.000000e+00> : vector<8x256xf32>
    %42 = tpu.matmul %41, %0, %cst_31 {dimension_numbers = #tpu.dot_dimension_numbers<[1], [0], [0], [1], [0, 0, 1, 1], [], []>} : vector<8x32xbf16>, vector<32x256xbf16>, vector<8x256xf32> -> vector<8x256xf32>
    %43 = vector.broadcast %2 : vector<1x256xf32> to vector<8x256xf32>
    %44 = arith.addf %42, %43 : vector<8x256xf32>
    %c4_32 = arith.constant 4 : index
    %c0_33 = arith.constant 0 : index
    %c0_34 = arith.constant 0 : index
    %45 = vector.load %arg8[%c4_32, %c0_33, %c0_34] : memref<8x8x256xf32, #tpu.memory_space<vmem>>, vector<1x8x256xf32>
    %46 = vector.shape_cast %45 : vector<1x8x256xf32> to vector<8x256xf32>
    %47 = vector.shape_cast %44 : vector<8x256xf32> to vector<1x8x256xf32>
    tpu.vector_store %arg8[%c4_32, %c0_33, %c0_34], %47 {strides = array<i32>} : memref<8x8x256xf32, #tpu.memory_space<vmem>>, vector<1x8x256xf32>,
    %c5 = arith.constant 5 : index
    %c0_35 = arith.constant 0 : index
    %c0_36 = arith.constant 0 : index
    %48 = vector.load %arg1[%c5, %c0_35, %c0_36] : memref<8x8x32xf32, #tpu.memory_space<vmem>>, vector<1x8x32xf32>
    %49 = vector.shape_cast %48 : vector<1x8x32xf32> to vector<8x32xf32>
    %50 = arith.truncf %49 : vector<8x32xf32> to vector<8x32xbf16>
    %cst_37 = arith.constant dense<0.000000e+00> : vector<8x256xf32>
    %51 = tpu.matmul %50, %0, %cst_37 {dimension_numbers = #tpu.dot_dimension_numbers<[1], [0], [0], [1], [0, 0, 1, 1], [], []>} : vector<8x32xbf16>, vector<32x256xbf16>, vector<8x256xf32> -> vector<8x256xf32>
    %52 = vector.broadcast %2 : vector<1x256xf32> to vector<8x256xf32>
    %53 = arith.addf %51, %52 : vector<8x256xf32>
    %c5_38 = arith.constant 5 : index
    %c0_39 = arith.constant 0 : index
    %c0_40 = arith.constant 0 : index
    %54 = vector.load %arg8[%c5_38, %c0_39, %c0_40] : memref<8x8x256xf32, #tpu.memory_space<vmem>>, vector<1x8x256xf32>
    %55 = vector.shape_cast %54 : vector<1x8x256xf32> to vector<8x256xf32>
    %56 = vector.shape_cast %53 : vector<8x256xf32> to vector<1x8x256xf32>
    tpu.vector_store %arg8[%c5_38, %c0_39, %c0_40], %56 {strides = array<i32>} : memref<8x8x256xf32, #tpu.memory_space<vmem>>, vector<1x8x256xf32>,
    %c6 = arith.constant 6 : index
    %c0_41 = arith.constant 0 : index
    %c0_42 = arith.constant 0 : index
    %57 = vector.load %arg1[%c6, %c0_41, %c0_42] : memref<8x8x32xf32, #tpu.memory_space<vmem>>, vector<1x8x32xf32>
    %58 = vector.shape_cast %57 : vector<1x8x32xf32> to vector<8x32xf32>
    %59 = arith.truncf %58 : vector<8x32xf32> to vector<8x32xbf16>
    %cst_43 = arith.constant dense<0.000000e+00> : vector<8x256xf32>
    %60 = tpu.matmul %59, %0, %cst_43 {dimension_numbers = #tpu.dot_dimension_numbers<[1], [0], [0], [1], [0, 0, 1, 1], [], []>} : vector<8x32xbf16>, vector<32x256xbf16>, vector<8x256xf32> -> vector<8x256xf32>
    %61 = vector.broadcast %2 : vector<1x256xf32> to vector<8x256xf32>
    %62 = arith.addf %60, %61 : vector<8x256xf32>
    %c6_44 = arith.constant 6 : index
    %c0_45 = arith.constant 0 : index
    %c0_46 = arith.constant 0 : index
    %63 = vector.load %arg8[%c6_44, %c0_45, %c0_46] : memref<8x8x256xf32, #tpu.memory_space<vmem>>, vector<1x8x256xf32>
    %64 = vector.shape_cast %63 : vector<1x8x256xf32> to vector<8x256xf32>
    %65 = vector.shape_cast %62 : vector<8x256xf32> to vector<1x8x256xf32>
    tpu.vector_store %arg8[%c6_44, %c0_45, %c0_46], %65 {strides = array<i32>} : memref<8x8x256xf32, #tpu.memory_space<vmem>>, vector<1x8x256xf32>,
    %c7 = arith.constant 7 : index
    %c0_47 = arith.constant 0 : index
    %c0_48 = arith.constant 0 : index
    %66 = vector.load %arg1[%c7, %c0_47, %c0_48] : memref<8x8x32xf32, #tpu.memory_space<vmem>>, vector<1x8x32xf32>
    %67 = vector.shape_cast %66 : vector<1x8x32xf32> to vector<8x32xf32>
    %68 = arith.truncf %67 : vector<8x32xf32> to vector<8x32xbf16>
    %cst_49 = arith.constant dense<0.000000e+00> : vector<8x256xf32>
    %69 = tpu.matmul %68, %0, %cst_49 {dimension_numbers = #tpu.dot_dimension_numbers<[1], [0], [0], [1], [0, 0, 1, 1], [], []>} : vector<8x32xbf16>, vector<32x256xbf16>, vector<8x256xf32> -> vector<8x256xf32>
    %70 = vector.broadcast %2 : vector<1x256xf32> to vector<8x256xf32>
    %71 = arith.addf %69, %70 : vector<8x256xf32>
    %c7_50 = arith.constant 7 : index
    %c0_51 = arith.constant 0 : index
    %c0_52 = arith.constant 0 : index
    %72 = vector.load %arg8[%c7_50, %c0_51, %c0_52] : memref<8x8x256xf32, #tpu.memory_space<vmem>>, vector<1x8x256xf32>
    %73 = vector.shape_cast %72 : vector<1x8x256xf32> to vector<8x256xf32>
    %74 = vector.shape_cast %71 : vector<8x256xf32> to vector<1x8x256xf32>
    tpu.vector_store %arg8[%c7_50, %c0_51, %c0_52], %74 {strides = array<i32>} : memref<8x8x256xf32, #tpu.memory_space<vmem>>, vector<1x8x256xf32>,
    %cst_53 = arith.constant 0.000000e+00 : f32
    %75 = vector.broadcast %cst_53 : f32 to vector<8x64xf32>
    %cst_54 = arith.constant 0.000000e+00 : f32
    %76 = vector.broadcast %cst_54 : f32 to vector<8x64xf32>
    %c0_i32 = arith.constant 0 : i32
    %77 = arith.index_cast %c0_i32 : i32 to index
    %c0_55 = arith.constant 0 : index
    %c0_56 = arith.constant 0 : index
    %78 = vector.load %arg8[%77, %c0_55, %c0_56] : memref<8x8x256xf32, #tpu.memory_space<vmem>>, vector<1x8x256xf32>
    %79 = vector.shape_cast %78 : vector<1x8x256xf32> to vector<8x256xf32>
    %80 = arith.truncf %75 : vector<8x64xf32> to vector<8x64xbf16>
    %cst_57 = arith.constant dense<0.000000e+00> : vector<8x256xf32>
    %81 = tpu.matmul %80, %1, %cst_57 {dimension_numbers = #tpu.dot_dimension_numbers<[1], [0], [0], [1], [0, 0, 1, 1], [], []>} : vector<8x64xbf16>, vector<64x256xbf16>, vector<8x256xf32> -> vector<8x256xf32>
    %82 = arith.addf %79, %81 : vector<8x256xf32>
    %83 = vector.extract_strided_slice %82 {offsets = [0, 0], sizes = [8, 192], strides = [1, 1]} : vector<8x256xf32> to vector<8x192xf32>
    %84 = arith.negf %83 : vector<8x192xf32>
    %85 = math.exp %84 : vector<8x192xf32>
    %cst_58 = arith.constant 1.000000e+00 : f32
    %86 = vector.broadcast %cst_58 : f32 to vector<8x192xf32>
    %87 = arith.addf %86, %85 : vector<8x192xf32>
    %88 = arith.divf %86, %87 : vector<8x192xf32>
    %89 = vector.extract_strided_slice %82 {offsets = [0, 192], sizes = [8, 64], strides = [1, 1]} : vector<8x256xf32> to vector<8x64xf32>
    %90 = math.tanh %89 : vector<8x64xf32>
    %91 = vector.extract_strided_slice %88 {offsets = [0, 0], sizes = [8, 64], strides = [1, 1]} : vector<8x192xf32> to vector<8x64xf32>
    %92 = vector.extract_strided_slice %88 {offsets = [0, 64], sizes = [8, 64], strides = [1, 1]} : vector<8x192xf32> to vector<8x64xf32>
    %93 = vector.extract_strided_slice %88 {offsets = [0, 128], sizes = [8, 64], strides = [1, 1]} : vector<8x192xf32> to vector<8x64xf32>
    %94 = arith.mulf %92, %76 : vector<8x64xf32>
    %95 = arith.mulf %91, %90 : vector<8x64xf32>
    %96 = arith.addf %94, %95 : vector<8x64xf32>
    %97 = math.tanh %96 : vector<8x64xf32>
    %98 = arith.mulf %93, %97 : vector<8x64xf32>
    %c1_i32 = arith.constant 1 : i32
    %99 = arith.index_cast %c1_i32 : i32 to index
    %c0_59 = arith.constant 0 : index
    %c0_60 = arith.constant 0 : index
    %100 = vector.load %arg8[%99, %c0_59, %c0_60] : memref<8x8x256xf32, #tpu.memory_space<vmem>>, vector<1x8x256xf32>
    %101 = vector.shape_cast %100 : vector<1x8x256xf32> to vector<8x256xf32>
    %102 = arith.truncf %98 : vector<8x64xf32> to vector<8x64xbf16>
    %cst_61 = arith.constant dense<0.000000e+00> : vector<8x256xf32>
    %103 = tpu.matmul %102, %1, %cst_61 {dimension_numbers = #tpu.dot_dimension_numbers<[1], [0], [0], [1], [0, 0, 1, 1], [], []>} : vector<8x64xbf16>, vector<64x256xbf16>, vector<8x256xf32> -> vector<8x256xf32>
    %104 = arith.addf %101, %103 : vector<8x256xf32>
    %105 = vector.extract_strided_slice %104 {offsets = [0, 0], sizes = [8, 192], strides = [1, 1]} : vector<8x256xf32> to vector<8x192xf32>
    %106 = arith.negf %105 : vector<8x192xf32>
    %107 = math.exp %106 : vector<8x192xf32>
    %cst_62 = arith.constant 1.000000e+00 : f32
    %108 = vector.broadcast %cst_62 : f32 to vector<8x192xf32>
    %109 = arith.addf %108, %107 : vector<8x192xf32>
    %110 = arith.divf %108, %109 : vector<8x192xf32>
    %111 = vector.extract_strided_slice %104 {offsets = [0, 192], sizes = [8, 64], strides = [1, 1]} : vector<8x256xf32> to vector<8x64xf32>
    %112 = math.tanh %111 : vector<8x64xf32>
    %113 = vector.extract_strided_slice %110 {offsets = [0, 0], sizes = [8, 64], strides = [1, 1]} : vector<8x192xf32> to vector<8x64xf32>
    %114 = vector.extract_strided_slice %110 {offsets = [0, 64], sizes = [8, 64], strides = [1, 1]} : vector<8x192xf32> to vector<8x64xf32>
    %115 = vector.extract_strided_slice %110 {offsets = [0, 128], sizes = [8, 64], strides = [1, 1]} : vector<8x192xf32> to vector<8x64xf32>
    %116 = arith.mulf %114, %96 : vector<8x64xf32>
    %117 = arith.mulf %113, %112 : vector<8x64xf32>
    %118 = arith.addf %116, %117 : vector<8x64xf32>
    %119 = math.tanh %118 : vector<8x64xf32>
    %120 = arith.mulf %115, %119 : vector<8x64xf32>
    %c2_i32 = arith.constant 2 : i32
    %121 = arith.index_cast %c2_i32 : i32 to index
    %c0_63 = arith.constant 0 : index
    %c0_64 = arith.constant 0 : index
    %122 = vector.load %arg8[%121, %c0_63, %c0_64] : memref<8x8x256xf32, #tpu.memory_space<vmem>>, vector<1x8x256xf32>
    %123 = vector.shape_cast %122 : vector<1x8x256xf32> to vector<8x256xf32>
    %124 = arith.truncf %120 : vector<8x64xf32> to vector<8x64xbf16>
    %cst_65 = arith.constant dense<0.000000e+00> : vector<8x256xf32>
    %125 = tpu.matmul %124, %1, %cst_65 {dimension_numbers = #tpu.dot_dimension_numbers<[1], [0], [0], [1], [0, 0, 1, 1], [], []>} : vector<8x64xbf16>, vector<64x256xbf16>, vector<8x256xf32> -> vector<8x256xf32>
    %126 = arith.addf %123, %125 : vector<8x256xf32>
    %127 = vector.extract_strided_slice %126 {offsets = [0, 0], sizes = [8, 192], strides = [1, 1]} : vector<8x256xf32> to vector<8x192xf32>
    %128 = arith.negf %127 : vector<8x192xf32>
    %129 = math.exp %128 : vector<8x192xf32>
    %cst_66 = arith.constant 1.000000e+00 : f32
    %130 = vector.broadcast %cst_66 : f32 to vector<8x192xf32>
    %131 = arith.addf %130, %129 : vector<8x192xf32>
    %132 = arith.divf %130, %131 : vector<8x192xf32>
    %133 = vector.extract_strided_slice %126 {offsets = [0, 192], sizes = [8, 64], strides = [1, 1]} : vector<8x256xf32> to vector<8x64xf32>
    %134 = math.tanh %133 : vector<8x64xf32>
    %135 = vector.extract_strided_slice %132 {offsets = [0, 0], sizes = [8, 64], strides = [1, 1]} : vector<8x192xf32> to vector<8x64xf32>
    %136 = vector.extract_strided_slice %132 {offsets = [0, 64], sizes = [8, 64], strides = [1, 1]} : vector<8x192xf32> to vector<8x64xf32>
    %137 = vector.extract_strided_slice %132 {offsets = [0, 128], sizes = [8, 64], strides = [1, 1]} : vector<8x192xf32> to vector<8x64xf32>
    %138 = arith.mulf %136, %118 : vector<8x64xf32>
    %139 = arith.mulf %135, %134 : vector<8x64xf32>
    %140 = arith.addf %138, %139 : vector<8x64xf32>
    %141 = math.tanh %140 : vector<8x64xf32>
    %142 = arith.mulf %137, %141 : vector<8x64xf32>
    %c3_i32 = arith.constant 3 : i32
    %143 = arith.index_cast %c3_i32 : i32 to index
    %c0_67 = arith.constant 0 : index
    %c0_68 = arith.constant 0 : index
    %144 = vector.load %arg8[%143, %c0_67, %c0_68] : memref<8x8x256xf32, #tpu.memory_space<vmem>>, vector<1x8x256xf32>
    %145 = vector.shape_cast %144 : vector<1x8x256xf32> to vector<8x256xf32>
    %146 = arith.truncf %142 : vector<8x64xf32> to vector<8x64xbf16>
    %cst_69 = arith.constant dense<0.000000e+00> : vector<8x256xf32>
    %147 = tpu.matmul %146, %1, %cst_69 {dimension_numbers = #tpu.dot_dimension_numbers<[1], [0], [0], [1], [0, 0, 1, 1], [], []>} : vector<8x64xbf16>, vector<64x256xbf16>, vector<8x256xf32> -> vector<8x256xf32>
    %148 = arith.addf %145, %147 : vector<8x256xf32>
    %149 = vector.extract_strided_slice %148 {offsets = [0, 0], sizes = [8, 192], strides = [1, 1]} : vector<8x256xf32> to vector<8x192xf32>
    %150 = arith.negf %149 : vector<8x192xf32>
    %151 = math.exp %150 : vector<8x192xf32>
    %cst_70 = arith.constant 1.000000e+00 : f32
    %152 = vector.broadcast %cst_70 : f32 to vector<8x192xf32>
    %153 = arith.addf %152, %151 : vector<8x192xf32>
    %154 = arith.divf %152, %153 : vector<8x192xf32>
    %155 = vector.extract_strided_slice %148 {offsets = [0, 192], sizes = [8, 64], strides = [1, 1]} : vector<8x256xf32> to vector<8x64xf32>
    %156 = math.tanh %155 : vector<8x64xf32>
    %157 = vector.extract_strided_slice %154 {offsets = [0, 0], sizes = [8, 64], strides = [1, 1]} : vector<8x192xf32> to vector<8x64xf32>
    %158 = vector.extract_strided_slice %154 {offsets = [0, 64], sizes = [8, 64], strides = [1, 1]} : vector<8x192xf32> to vector<8x64xf32>
    %159 = vector.extract_strided_slice %154 {offsets = [0, 128], sizes = [8, 64], strides = [1, 1]} : vector<8x192xf32> to vector<8x64xf32>
    %160 = arith.mulf %158, %140 : vector<8x64xf32>
    %161 = arith.mulf %157, %156 : vector<8x64xf32>
    %162 = arith.addf %160, %161 : vector<8x64xf32>
    %163 = math.tanh %162 : vector<8x64xf32>
    %164 = arith.mulf %159, %163 : vector<8x64xf32>
    %c4_i32 = arith.constant 4 : i32
    %165 = arith.index_cast %c4_i32 : i32 to index
    %c0_71 = arith.constant 0 : index
    %c0_72 = arith.constant 0 : index
    %166 = vector.load %arg8[%165, %c0_71, %c0_72] : memref<8x8x256xf32, #tpu.memory_space<vmem>>, vector<1x8x256xf32>
    %167 = vector.shape_cast %166 : vector<1x8x256xf32> to vector<8x256xf32>
    %168 = arith.truncf %164 : vector<8x64xf32> to vector<8x64xbf16>
    %cst_73 = arith.constant dense<0.000000e+00> : vector<8x256xf32>
    %169 = tpu.matmul %168, %1, %cst_73 {dimension_numbers = #tpu.dot_dimension_numbers<[1], [0], [0], [1], [0, 0, 1, 1], [], []>} : vector<8x64xbf16>, vector<64x256xbf16>, vector<8x256xf32> -> vector<8x256xf32>
    %170 = arith.addf %167, %169 : vector<8x256xf32>
    %171 = vector.extract_strided_slice %170 {offsets = [0, 0], sizes = [8, 192], strides = [1, 1]} : vector<8x256xf32> to vector<8x192xf32>
    %172 = arith.negf %171 : vector<8x192xf32>
    %173 = math.exp %172 : vector<8x192xf32>
    %cst_74 = arith.constant 1.000000e+00 : f32
    %174 = vector.broadcast %cst_74 : f32 to vector<8x192xf32>
    %175 = arith.addf %174, %173 : vector<8x192xf32>
    %176 = arith.divf %174, %175 : vector<8x192xf32>
    %177 = vector.extract_strided_slice %170 {offsets = [0, 192], sizes = [8, 64], strides = [1, 1]} : vector<8x256xf32> to vector<8x64xf32>
    %178 = math.tanh %177 : vector<8x64xf32>
    %179 = vector.extract_strided_slice %176 {offsets = [0, 0], sizes = [8, 64], strides = [1, 1]} : vector<8x192xf32> to vector<8x64xf32>
    %180 = vector.extract_strided_slice %176 {offsets = [0, 64], sizes = [8, 64], strides = [1, 1]} : vector<8x192xf32> to vector<8x64xf32>
    %181 = vector.extract_strided_slice %176 {offsets = [0, 128], sizes = [8, 64], strides = [1, 1]} : vector<8x192xf32> to vector<8x64xf32>
    %182 = arith.mulf %180, %162 : vector<8x64xf32>
    %183 = arith.mulf %179, %178 : vector<8x64xf32>
    %184 = arith.addf %182, %183 : vector<8x64xf32>
    %185 = math.tanh %184 : vector<8x64xf32>
    %186 = arith.mulf %181, %185 : vector<8x64xf32>
    %c5_i32 = arith.constant 5 : i32
    %187 = arith.index_cast %c5_i32 : i32 to index
    %c0_75 = arith.constant 0 : index
    %c0_76 = arith.constant 0 : index
    %188 = vector.load %arg8[%187, %c0_75, %c0_76] : memref<8x8x256xf32, #tpu.memory_space<vmem>>, vector<1x8x256xf32>
    %189 = vector.shape_cast %188 : vector<1x8x256xf32> to vector<8x256xf32>
    %190 = arith.truncf %186 : vector<8x64xf32> to vector<8x64xbf16>
    %cst_77 = arith.constant dense<0.000000e+00> : vector<8x256xf32>
    %191 = tpu.matmul %190, %1, %cst_77 {dimension_numbers = #tpu.dot_dimension_numbers<[1], [0], [0], [1], [0, 0, 1, 1], [], []>} : vector<8x64xbf16>, vector<64x256xbf16>, vector<8x256xf32> -> vector<8x256xf32>
    %192 = arith.addf %189, %191 : vector<8x256xf32>
    %193 = vector.extract_strided_slice %192 {offsets = [0, 0], sizes = [8, 192], strides = [1, 1]} : vector<8x256xf32> to vector<8x192xf32>
    %194 = arith.negf %193 : vector<8x192xf32>
    %195 = math.exp %194 : vector<8x192xf32>
    %cst_78 = arith.constant 1.000000e+00 : f32
    %196 = vector.broadcast %cst_78 : f32 to vector<8x192xf32>
    %197 = arith.addf %196, %195 : vector<8x192xf32>
    %198 = arith.divf %196, %197 : vector<8x192xf32>
    %199 = vector.extract_strided_slice %192 {offsets = [0, 192], sizes = [8, 64], strides = [1, 1]} : vector<8x256xf32> to vector<8x64xf32>
    %200 = math.tanh %199 : vector<8x64xf32>
    %201 = vector.extract_strided_slice %198 {offsets = [0, 0], sizes = [8, 64], strides = [1, 1]} : vector<8x192xf32> to vector<8x64xf32>
    %202 = vector.extract_strided_slice %198 {offsets = [0, 64], sizes = [8, 64], strides = [1, 1]} : vector<8x192xf32> to vector<8x64xf32>
    %203 = vector.extract_strided_slice %198 {offsets = [0, 128], sizes = [8, 64], strides = [1, 1]} : vector<8x192xf32> to vector<8x64xf32>
    %204 = arith.mulf %202, %184 : vector<8x64xf32>
    %205 = arith.mulf %201, %200 : vector<8x64xf32>
    %206 = arith.addf %204, %205 : vector<8x64xf32>
    %207 = math.tanh %206 : vector<8x64xf32>
    %208 = arith.mulf %203, %207 : vector<8x64xf32>
    %c6_i32 = arith.constant 6 : i32
    %209 = arith.index_cast %c6_i32 : i32 to index
    %c0_79 = arith.constant 0 : index
    %c0_80 = arith.constant 0 : index
    %210 = vector.load %arg8[%209, %c0_79, %c0_80] : memref<8x8x256xf32, #tpu.memory_space<vmem>>, vector<1x8x256xf32>
    %211 = vector.shape_cast %210 : vector<1x8x256xf32> to vector<8x256xf32>
    %212 = arith.truncf %208 : vector<8x64xf32> to vector<8x64xbf16>
    %cst_81 = arith.constant dense<0.000000e+00> : vector<8x256xf32>
    %213 = tpu.matmul %212, %1, %cst_81 {dimension_numbers = #tpu.dot_dimension_numbers<[1], [0], [0], [1], [0, 0, 1, 1], [], []>} : vector<8x64xbf16>, vector<64x256xbf16>, vector<8x256xf32> -> vector<8x256xf32>
    %214 = arith.addf %211, %213 : vector<8x256xf32>
    %215 = vector.extract_strided_slice %214 {offsets = [0, 0], sizes = [8, 192], strides = [1, 1]} : vector<8x256xf32> to vector<8x192xf32>
    %216 = arith.negf %215 : vector<8x192xf32>
    %217 = math.exp %216 : vector<8x192xf32>
    %cst_82 = arith.constant 1.000000e+00 : f32
    %218 = vector.broadcast %cst_82 : f32 to vector<8x192xf32>
    %219 = arith.addf %218, %217 : vector<8x192xf32>
    %220 = arith.divf %218, %219 : vector<8x192xf32>
    %221 = vector.extract_strided_slice %214 {offsets = [0, 192], sizes = [8, 64], strides = [1, 1]} : vector<8x256xf32> to vector<8x64xf32>
    %222 = math.tanh %221 : vector<8x64xf32>
    %223 = vector.extract_strided_slice %220 {offsets = [0, 0], sizes = [8, 64], strides = [1, 1]} : vector<8x192xf32> to vector<8x64xf32>
    %224 = vector.extract_strided_slice %220 {offsets = [0, 64], sizes = [8, 64], strides = [1, 1]} : vector<8x192xf32> to vector<8x64xf32>
    %225 = vector.extract_strided_slice %220 {offsets = [0, 128], sizes = [8, 64], strides = [1, 1]} : vector<8x192xf32> to vector<8x64xf32>
    %226 = arith.mulf %224, %206 : vector<8x64xf32>
    %227 = arith.mulf %223, %222 : vector<8x64xf32>
    %228 = arith.addf %226, %227 : vector<8x64xf32>
    %229 = math.tanh %228 : vector<8x64xf32>
    %230 = arith.mulf %225, %229 : vector<8x64xf32>
    %c7_i32 = arith.constant 7 : i32
    %231 = arith.index_cast %c7_i32 : i32 to index
    %c0_83 = arith.constant 0 : index
    %c0_84 = arith.constant 0 : index
    %232 = vector.load %arg8[%231, %c0_83, %c0_84] : memref<8x8x256xf32, #tpu.memory_space<vmem>>, vector<1x8x256xf32>
    %233 = vector.shape_cast %232 : vector<1x8x256xf32> to vector<8x256xf32>
    %234 = arith.truncf %230 : vector<8x64xf32> to vector<8x64xbf16>
    %cst_85 = arith.constant dense<0.000000e+00> : vector<8x256xf32>
    %235 = tpu.matmul %234, %1, %cst_85 {dimension_numbers = #tpu.dot_dimension_numbers<[1], [0], [0], [1], [0, 0, 1, 1], [], []>} : vector<8x64xbf16>, vector<64x256xbf16>, vector<8x256xf32> -> vector<8x256xf32>
    %236 = arith.addf %233, %235 : vector<8x256xf32>
    %237 = vector.extract_strided_slice %236 {offsets = [0, 0], sizes = [8, 192], strides = [1, 1]} : vector<8x256xf32> to vector<8x192xf32>
    %238 = arith.negf %237 : vector<8x192xf32>
    %239 = math.exp %238 : vector<8x192xf32>
    %cst_86 = arith.constant 1.000000e+00 : f32
    %240 = vector.broadcast %cst_86 : f32 to vector<8x192xf32>
    %241 = arith.addf %240, %239 : vector<8x192xf32>
    %242 = arith.divf %240, %241 : vector<8x192xf32>
    %243 = vector.extract_strided_slice %236 {offsets = [0, 192], sizes = [8, 64], strides = [1, 1]} : vector<8x256xf32> to vector<8x64xf32>
    %244 = math.tanh %243 : vector<8x64xf32>
    %245 = vector.extract_strided_slice %242 {offsets = [0, 0], sizes = [8, 64], strides = [1, 1]} : vector<8x192xf32> to vector<8x64xf32>
    %246 = vector.extract_strided_slice %242 {offsets = [0, 64], sizes = [8, 64], strides = [1, 1]} : vector<8x192xf32> to vector<8x64xf32>
    %247 = vector.extract_strided_slice %242 {offsets = [0, 128], sizes = [8, 64], strides = [1, 1]} : vector<8x192xf32> to vector<8x64xf32>
    %248 = arith.mulf %246, %228 : vector<8x64xf32>
    %249 = arith.mulf %245, %244 : vector<8x64xf32>
    %250 = arith.addf %248, %249 : vector<8x64xf32>
    %251 = math.tanh %250 : vector<8x64xf32>
    %252 = arith.mulf %247, %251 : vector<8x64xf32>
    %c8_i32 = arith.constant 8 : i32
    %253 = arith.truncf %252 : vector<8x64xf32> to vector<8x64xbf16>
    %c0_87 = arith.constant 0 : index
    %c0_88 = arith.constant 0 : index
    %254 = vector.load %arg5[%c0_87, %c0_88] : memref<64x128xbf16, #tpu.memory_space<vmem>>, vector<64x128xbf16>
    %cst_89 = arith.constant dense<0.000000e+00> : vector<8x128xf32>
    %255 = tpu.matmul %253, %254, %cst_89 {dimension_numbers = #tpu.dot_dimension_numbers<[1], [0], [0], [1], [0, 0, 1, 1], [], []>} : vector<8x64xbf16>, vector<64x128xbf16>, vector<8x128xf32> -> vector<8x128xf32>
    %c0_90 = arith.constant 0 : index
    %c0_91 = arith.constant 0 : index
    %256 = vector.load %arg6[%c0_90, %c0_91] : memref<1x128xf32, #tpu.memory_space<vmem>>, vector<1x128xf32>
    %257 = vector.broadcast %256 : vector<1x128xf32> to vector<8x128xf32>
    %258 = arith.addf %255, %257 : vector<8x128xf32>
    %c0_92 = arith.constant 0 : index
    %c0_93 = arith.constant 0 : index
    %259 = vector.load %arg7[%c0_92, %c0_93] : memref<8x128xf32, #tpu.memory_space<vmem>>, vector<8x128xf32>
    tpu.vector_store %arg7[%c0_92, %c0_93], %258 {strides = array<i32>} : memref<8x128xf32, #tpu.memory_space<vmem>>, vector<8x128xf32>,
    return
  }
  func.func @transform_0(%arg0: i32) -> (i32, i32, i32) {
    %c0_i32 = arith.constant 0 : i32
    %c0_i32_0 = arith.constant 0 : i32
    %c0_i32_1 = arith.constant 0 : i32
    return %c0_i32, %arg0, %c0_i32_0 : i32, i32, i32
  }
  func.func @transform_1(%arg0: i32) -> (i32, i32) {
    %c0_i32 = arith.constant 0 : i32
    %c0_i32_0 = arith.constant 0 : i32
    %c0_i32_1 = arith.constant 0 : i32
    return %c0_i32, %c0_i32_0 : i32, i32
  }
  func.func @transform_2(%arg0: i32) -> (i32, i32) {
    %c0_i32 = arith.constant 0 : i32
    %c0_i32_0 = arith.constant 0 : i32
    %c0_i32_1 = arith.constant 0 : i32
    return %c0_i32, %c0_i32_0 : i32, i32
  }
  func.func @transform_3(%arg0: i32) -> (i32, i32) {
    %c0_i32 = arith.constant 0 : i32
    %c0_i32_0 = arith.constant 0 : i32
    %c0_i32_1 = arith.constant 0 : i32
    return %c0_i32, %c0_i32_0 : i32, i32
  }
  func.func @transform_4(%arg0: i32) -> (i32, i32) {
    %c0_i32 = arith.constant 0 : i32
    %c0_i32_0 = arith.constant 0 : i32
    %c0_i32_1 = arith.constant 0 : i32
    return %c0_i32, %c0_i32_0 : i32, i32
  }
  func.func @transform_5(%arg0: i32) -> (i32, i32) {
    %c0_i32 = arith.constant 0 : i32
    %c0_i32_0 = arith.constant 0 : i32
    %c0_i32_1 = arith.constant 0 : i32
    return %c0_i32, %c0_i32_0 : i32, i32
  }
  func.func @transform_6(%arg0: i32) -> (i32, i32) {
    %c0_i32 = arith.constant 0 : i32
    %c0_i32_0 = arith.constant 0 : i32
    return %arg0, %c0_i32 : i32, i32
  }
}

</mosaic_0001>

<llo_original>
// kernel: rnn_forward.1
$region0: #{rnn_forward.1}
  #allocation0 [shape = 'u32[]', space=smem, size = 0x4, offset = 0x4, fixed_abs, tag = 'smem constant byte address 0x4 - core index']
  #allocation1 [shape = 'u32[72,128]{1,0:T(1,128)}', space=vmem, size = 0x9000, scoped, tag = 'internal scratch']
  #allocation2 [shape = 'f32[8,8,256]{2,1,0:T(8,128)}', space=vmem, size = 0x10000, scoped, tag = 'scratch operand']
  %s0 = inlined_call_operand.vmem [shape: f32[8,8,32], index: 0, kind: input, shape index: {}]
  %s1 = inlined_call_operand.vmem [shape: bf16[32,256], index: 1, kind: input, shape index: {}]
  %s2 = inlined_call_operand.vmem [shape: bf16[64,256], index: 2, kind: input, shape index: {}]
  %s3 = inlined_call_operand.vmem [shape: f32[1,256], index: 3, kind: input, shape index: {}]
  %s4 = inlined_call_operand.hbm [shape: bf16[64,128], index: 4, kind: input, shape index: {}]
  %s5 = inlined_call_operand.vmem [shape: f32[1,128], index: 5, kind: input, shape index: {}]
  %s6 = inlined_call_operand.vmem [shape: f32[8,128], index: 6, kind: output, shape index: {}]
  %s7 = sld [smem:[#allocation0]]
  $region38: #{rnn_forward.1} parent=0
    _
  %s9 = ssub.s32 1, %s7
  %s10 = scalar_select 0, %s9, %s7
  $region1: #{rnn_forward.1} parent=0
    #allocation3 [shape = 'u8[16384]{0}', space=vmem, size = 0x4000, scoped, tag = 'input window, operand 4, single buffered']
    #allocation4 [shape = 's32[1]{0}', space=sflag, size = 0x4, scoped, tag = 'scoped memory for rnn_forward.1']
    %11 = vsyncpa [#allocation4], 0
    // Predicated region
    $region2: #{rnn_forward.1} parent=1 // pred_check
      _
    $region3: #{rnn_forward.1} parent=1 // pred_check_branch
      %13 = sbr.rel (0) target = $region5
    $region4: #{rnn_forward.1} parent=1 // pred_region
      _
    $region5: #{rnn_forward.1} parent=1 // pred_fallthru
      _
    // Predicated region
    $region6: #{rnn_forward.1} parent=1 // pred_check
      _
    $region7: #{rnn_forward.1} parent=1 // pred_check_branch
      %15 = sbr.rel (0) target = $region9
    $region8: #{rnn_forward.1} parent=1 // pred_region
      _
    $region9: #{rnn_forward.1} parent=1 // pred_fallthru
      _
    // Predicated region
    $region10: #{rnn_forward.1} parent=1 // pred_check
      _
    $region11: #{rnn_forward.1} parent=1 // pred_check_branch
      %17 = sbr.rel (0) target = $region13
    $region12: #{rnn_forward.1} parent=1 // pred_region
      _
    $region13: #{rnn_forward.1} parent=1 // pred_fallthru
      _
    // Predicated region
    $region14: #{rnn_forward.1} parent=1 // pred_check
      _
    $region15: #{rnn_forward.1} parent=1 // pred_check_branch
      %19 = sbr.rel (0) target = $region17
    $region16: #{rnn_forward.1} parent=1 // pred_region
      _
    $region17: #{rnn_forward.1} parent=1 // pred_fallthru
      _
    // Predicated region
    $region18: #{rnn_forward.1} parent=1 // pred_check
      _
    $region19: #{rnn_forward.1} parent=1 // pred_check_branch
      %21 = sbr.rel (0) target = $region21
    $region20: #{rnn_forward.1} parent=1 // pred_region
      %23 = vsyncadd [#allocation4], 0
      %s24 = sshll.u32 %s4, 4
      %s25 = int_to_ptr.hbm [resolvable:$true] %s24
      %s26 = sshll.u32 [#allocation3], 4
      %s27 = int_to_ptr.vmem [resolvable:$true] %s26
      %32 = dma.hbm_to_vmem [thread:$0]  %s25, 512, %s27, [#allocation4], 64, 64, 4
    $region21: #{rnn_forward.1} parent=1 // pred_fallthru
      _
    // Predicated region
    $region22: #{rnn_forward.1} parent=1 // pred_check
      _
    $region23: #{rnn_forward.1} parent=1 // pred_check_branch
      %34 = sbr.rel (0) target = $region25
    $region24: #{rnn_forward.1} parent=1 // pred_region
      _
    $region25: #{rnn_forward.1} parent=1 // pred_fallthru
      _
    // Predicated region
    $region26: #{rnn_forward.1} parent=1 // pred_check
      _
    $region27: #{rnn_forward.1} parent=1 // pred_check_branch
      %36 = sbr.rel (0) target = $region29
    $region28: #{rnn_forward.1} parent=1 // pred_region
      %38 = dma.done [#allocation4], 512
    $region29: #{rnn_forward.1} parent=1 // pred_fallthru
      _
    %v40 = vld [vmem:[%s1] sm:$0xff]
    %v41 = vld [vmem:[%s1 + $0x8] sm:$0xff]
    %v42 = vld [vmem:[%s1 + $0x10] sm:$0xff]
    %v43 = vld [vmem:[%s1 + $0x18] sm:$0xff]
    %v44 = vld [vmem:[%s2] sm:$0xff]
    %v45 = vld [vmem:[%s2 + $0x8] sm:$0xff]
    %v46 = vld [vmem:[%s2 + $0x10] sm:$0xff]
    %v47 = vld [vmem:[%s2 + $0x18] sm:$0xff]
    %v48 = vld [vmem:[%s2 + $0x20] sm:$0xff]
    %v49 = vld [vmem:[%s2 + $0x28] sm:$0xff]
    %v50 = vld [vmem:[%s2 + $0x30] sm:$0xff]
    %v51 = vld [vmem:[%s2 + $0x38] sm:$0xff]
    %v52 = vld [vmem:[%s3] sm:$0x3]
    %v53 = vld [vmem:[%s0] sm:$0xff]
    %v54 = vpack.c.bf16 %v53, %v53
    %v56 = vperm.slane %v52, 0
    %v57 = vperm.slane %v52, 1
    %v64 = vunpack.c.l.b16 %v40
    %v65 = vunpack.c.h.b16 %v40
    %v66 = vunpack.c.l.b16 %v41
    %v67 = vunpack.c.h.b16 %v41
    %v68 = vunpack.c.l.b16 %v42
    %v69 = vunpack.c.h.b16 %v42
    %v70 = vunpack.c.l.b16 %v43
    %v71 = vunpack.c.h.b16 %v43
    %v72 = vpack.c.b16 %v66, %v64
    %v73 = vpack.c.b16 %v67, %v65
    %v74 = vpack.c.b16 %v70, %v68
    %v75 = vpack.c.b16 %v71, %v69
    %vm80 = vcmask 261120
    %v82 = vsel %vm80, %v54, 0
    %84 = vmatpush.bf16.msra.mxu0 0
    %85 = vmatpush.bf16.msra.mxu0 0
    %86 = vmatpush.bf16.msra.mxu0 0
    %87 = vmatpush.bf16.msra.mxu0 0
    %88 = vmatpush.bf16.msra.mxu0 0
    %89 = vmatpush.bf16.msra.mxu0 0
    %90 = vmatpush.bf16.msra.mxu0 %v74
    %91 = vmatpush.bf16.msra.mxu0 %v72
    %92 = vmatmul.bf16.gmra.mxu0 %v82
    %v93 = vpop.f32.mrf.mxu0
    %v94 = vadd.f32 %v56, %v93
    %v95 = vpop.f32.mrf.mxu0
    %96 = vdwg.mxu0
    %97 = vmatpush.bf16.msra.mxu0 0
    %98 = vmatpush.bf16.msra.mxu0 0
    %99 = vmatpush.bf16.msra.mxu0 0
    %100 = vmatpush.bf16.msra.mxu0 0
    %101 = vmatpush.bf16.msra.mxu0 0
    %102 = vmatpush.bf16.msra.mxu0 0
    %103 = vmatpush.bf16.msra.mxu0 %v75
    %104 = vmatpush.bf16.msra.mxu0 %v73
    %105 = vmatmul.bf16.gmra.mxu0 %v82
    %v106 = vpop.f32.mrf.mxu0
    %v107 = vadd.f32 %v57, %v106
    %v108 = vpop.f32.mrf.mxu0
    %109 = vdwg.mxu0
    %110 = vst [vmem:[#allocation2] sm:$0xff] %v94
    %111 = vst [vmem:[#allocation2 + $0x8] sm:$0xff] %v107
    %s112 = scalar_lea.vmem %s0, 8
    %v113 = vld [vmem:[%s112] sm:$0xff]
    %v114 = vpack.c.bf16 %v113, %v113
    %v116 = vsel %vm80, %v114, 0
    %118 = vmatpush.bf16.msra.mxu0 0
    %119 = vmatpush.bf16.msra.mxu0 0
    %120 = vmatpush.bf16.msra.mxu0 0
    %121 = vmatpush.bf16.msra.mxu0 0
    %122 = vmatpush.bf16.msra.mxu0 0
    %123 = vmatpush.bf16.msra.mxu0 0
    %124 = vmatpush.bf16.msra.mxu0 %v74
    %125 = vmatpush.bf16.msra.mxu0 %v72
    %126 = vmatmul.bf16.gmra.mxu0 %v116
    %v127 = vpop.f32.mrf.mxu0
    %v128 = vadd.f32 %v56, %v127
    %v129 = vpop.f32.mrf.mxu0
    %130 = vdwg.mxu0
    %131 = vmatpush.bf16.msra.mxu0 0
    %132 = vmatpush.bf16.msra.mxu0 0
    %133 = vmatpush.bf16.msra.mxu0 0
    %134 = vmatpush.bf16.msra.mxu0 0
    %135 = vmatpush.bf16.msra.mxu0 0
    %136 = vmatpush.bf16.msra.mxu0 0
    %137 = vmatpush.bf16.msra.mxu0 %v75
    %138 = vmatpush.bf16.msra.mxu0 %v73
    %139 = vmatmul.bf16.gmra.mxu0 %v116
    %v140 = vpop.f32.mrf.mxu0
    %v141 = vadd.f32 %v57, %v140
    %v142 = vpop.f32.mrf.mxu0
    %143 = vdwg.mxu0
    %s144 = scalar_lea.vmem [#allocation2], 16
    %145 = vst [vmem:[%s144] sm:$0xff] %v128
    %146 = vst [vmem:[%s144 + $0x8] sm:$0xff] %v141
    %s147 = scalar_lea.vmem %s0, 16
    %v148 = vld [vmem:[%s147] sm:$0xff]
    %v149 = vpack.c.bf16 %v148, %v148
    %v151 = vsel %vm80, %v149, 0
    %153 = vmatpush.bf16.msra.mxu0 0
    %154 = vmatpush.bf16.msra.mxu0 0
    %155 = vmatpush.bf16.msra.mxu0 0
    %156 = vmatpush.bf16.msra.mxu0 0
    %157 = vmatpush.bf16.msra.mxu0 0
    %158 = vmatpush.bf16.msra.mxu0 0
    %159 = vmatpush.bf16.msra.mxu0 %v74
    %160 = vmatpush.bf16.msra.mxu0 %v72
    %161 = vmatmul.bf16.gmra.mxu0 %v151
    %v162 = vpop.f32.mrf.mxu0
    %v163 = vadd.f32 %v56, %v162
    %v164 = vpop.f32.mrf.mxu0
    %165 = vdwg.mxu0
    %166 = vmatpush.bf16.msra.mxu0 0
    %167 = vmatpush.bf16.msra.mxu0 0
    %168 = vmatpush.bf16.msra.mxu0 0
    %169 = vmatpush.bf16.msra.mxu0 0
    %170 = vmatpush.bf16.msra.mxu0 0
    %171 = vmatpush.bf16.msra.mxu0 0
    %172 = vmatpush.bf16.msra.mxu0 %v75
    %173 = vmatpush.bf16.msra.mxu0 %v73
    %174 = vmatmul.bf16.gmra.mxu0 %v151
    %v175 = vpop.f32.mrf.mxu0
    %v176 = vadd.f32 %v57, %v175
    %v177 = vpop.f32.mrf.mxu0
    %178 = vdwg.mxu0
    %s179 = scalar_lea.vmem [#allocation2], 32
    %180 = vst [vmem:[%s179] sm:$0xff] %v163
    %181 = vst [vmem:[%s179 + $0x8] sm:$0xff] %v176
    %s182 = scalar_lea.vmem %s0, 24
    %v183 = vld [vmem:[%s182] sm:$0xff]
    %v184 = vpack.c.bf16 %v183, %v183
    %v186 = vsel %vm80, %v184, 0
    %188 = vmatpush.bf16.msra.mxu0 0
    %189 = vmatpush.bf16.msra.mxu0 0
    %190 = vmatpush.bf16.msra.mxu0 0
    %191 = vmatpush.bf16.msra.mxu0 0
    %192 = vmatpush.bf16.msra.mxu0 0
    %193 = vmatpush.bf16.msra.mxu0 0
    %194 = vmatpush.bf16.msra.mxu0 %v74
    %195 = vmatpush.bf16.msra.mxu0 %v72
    %196 = vmatmul.bf16.gmra.mxu0 %v186
    %v197 = vpop.f32.mrf.mxu0
    %v198 = vadd.f32 %v56, %v197
    %v199 = vpop.f32.mrf.mxu0
    %200 = vdwg.mxu0
    %201 = vmatpush.bf16.msra.mxu0 0
    %202 = vmatpush.bf16.msra.mxu0 0
    %203 = vmatpush.bf16.msra.mxu0 0
    %204 = vmatpush.bf16.msra.mxu0 0
    %205 = vmatpush.bf16.msra.mxu0 0
    %206 = vmatpush.bf16.msra.mxu0 0
    %207 = vmatpush.bf16.msra.mxu0 %v75
    %208 = vmatpush.bf16.msra.mxu0 %v73
    %209 = vmatmul.bf16.gmra.mxu0 %v186
    %v210 = vpop.f32.mrf.mxu0
    %v211 = vadd.f32 %v57, %v210
    %v212 = vpop.f32.mrf.mxu0
    %213 = vdwg.mxu0
    %s214 = scalar_lea.vmem [#allocation2], 48
    %215 = vst [vmem:[%s214] sm:$0xff] %v198
    %216 = vst [vmem:[%s214 + $0x8] sm:$0xff] %v211
    %s217 = scalar_lea.vmem %s0, 32
    %v218 = vld [vmem:[%s217] sm:$0xff]
    %v219 = vpack.c.bf16 %v218, %v218
    %v221 = vsel %vm80, %v219, 0
    %223 = vmatpush.bf16.msra.mxu0 0
    %224 = vmatpush.bf16.msra.mxu0 0
    %225 = vmatpush.bf16.msra.mxu0 0
    %226 = vmatpush.bf16.msra.mxu0 0
    %227 = vmatpush.bf16.msra.mxu0 0
    %228 = vmatpush.bf16.msra.mxu0 0
    %229 = vmatpush.bf16.msra.mxu0 %v74
    %230 = vmatpush.bf16.msra.mxu0 %v72
    %231 = vmatmul.bf16.gmra.mxu0 %v221
    %v232 = vpop.f32.mrf.mxu0
    %v233 = vadd.f32 %v56, %v232
    %v234 = vpop.f32.mrf.mxu0
    %235 = vdwg.mxu0
    %236 = vmatpush.bf16.msra.mxu0 0
    %237 = vmatpush.bf16.msra.mxu0 0
    %238 = vmatpush.bf16.msra.mxu0 0
    %239 = vmatpush.bf16.msra.mxu0 0
    %240 = vmatpush.bf16.msra.mxu0 0
    %241 = vmatpush.bf16.msra.mxu0 0
    %242 = vmatpush.bf16.msra.mxu0 %v75
    %243 = vmatpush.bf16.msra.mxu0 %v73
    %244 = vmatmul.bf16.gmra.mxu0 %v221
    %v245 = vpop.f32.mrf.mxu0
    %v246 = vadd.f32 %v57, %v245
    %v247 = vpop.f32.mrf.mxu0
    %248 = vdwg.mxu0
    %s249 = scalar_lea.vmem [#allocation2], 64
    %250 = vst [vmem:[%s249] sm:$0xff] %v233
    %251 = vst [vmem:[%s249 + $0x8] sm:$0xff] %v246
    %s252 = scalar_lea.vmem %s0, 40
    %v253 = vld [vmem:[%s252] sm:$0xff]
    %v254 = vpack.c.bf16 %v253, %v253
    %v256 = vsel %vm80, %v254, 0
    %258 = vmatpush.bf16.msra.mxu0 0
    %259 = vmatpush.bf16.msra.mxu0 0
    %260 = vmatpush.bf16.msra.mxu0 0
    %261 = vmatpush.bf16.msra.mxu0 0
    %262 = vmatpush.bf16.msra.mxu0 0
    %263 = vmatpush.bf16.msra.mxu0 0
    %264 = vmatpush.bf16.msra.mxu0 %v74
    %265 = vmatpush.bf16.msra.mxu0 %v72
    %266 = vmatmul.bf16.gmra.mxu0 %v256
    %v267 = vpop.f32.mrf.mxu0
    %v268 = vadd.f32 %v56, %v267
    %v269 = vpop.f32.mrf.mxu0
    %270 = vdwg.mxu0
    %271 = vmatpush.bf16.msra.mxu0 0
    %272 = vmatpush.bf16.msra.mxu0 0
    %273 = vmatpush.bf16.msra.mxu0 0
    %274 = vmatpush.bf16.msra.mxu0 0
    %275 = vmatpush.bf16.msra.mxu0 0
    %276 = vmatpush.bf16.msra.mxu0 0
    %277 = vmatpush.bf16.msra.mxu0 %v75
    %278 = vmatpush.bf16.msra.mxu0 %v73
    %279 = vmatmul.bf16.gmra.mxu0 %v256
    %v280 = vpop.f32.mrf.mxu0
    %v281 = vadd.f32 %v57, %v280
    %v282 = vpop.f32.mrf.mxu0
    %283 = vdwg.mxu0
    %s284 = scalar_lea.vmem [#allocation2], 80
    %285 = vst [vmem:[%s284] sm:$0xff] %v268
    %286 = vst [vmem:[%s284 + $0x8] sm:$0xff] %v281
    %s287 = scalar_lea.vmem %s0, 48
    %v288 = vld [vmem:[%s287] sm:$0xff]
    %v289 = vpack.c.bf16 %v288, %v288
    %v291 = vsel %vm80, %v289, 0
    %293 = vmatpush.bf16.msra.mxu0 0
    %294 = vmatpush.bf16.msra.mxu0 0
    %295 = vmatpush.bf16.msra.mxu0 0
    %296 = vmatpush.bf16.msra.mxu0 0
    %297 = vmatpush.bf16.msra.mxu0 0
    %298 = vmatpush.bf16.msra.mxu0 0
    %299 = vmatpush.bf16.msra.mxu0 %v74
    %300 = vmatpush.bf16.msra.mxu0 %v72
    %301 = vmatmul.bf16.gmra.mxu0 %v291
    %v302 = vpop.f32.mrf.mxu0
    %v303 = vadd.f32 %v56, %v302
    %v304 = vpop.f32.mrf.mxu0
    %305 = vdwg.mxu0
    %306 = vmatpush.bf16.msra.mxu0 0
    %307 = vmatpush.bf16.msra.mxu0 0
    %308 = vmatpush.bf16.msra.mxu0 0
    %309 = vmatpush.bf16.msra.mxu0 0
    %310 = vmatpush.bf16.msra.mxu0 0
    %311 = vmatpush.bf16.msra.mxu0 0
    %312 = vmatpush.bf16.msra.mxu0 %v75
    %313 = vmatpush.bf16.msra.mxu0 %v73
    %314 = vmatmul.bf16.gmra.mxu0 %v291
    %v315 = vpop.f32.mrf.mxu0
    %v316 = vadd.f32 %v57, %v315
    %v317 = vpop.f32.mrf.mxu0
    %318 = vdwg.mxu0
    %s319 = scalar_lea.vmem [#allocation2], 96
    %320 = vst [vmem:[%s319] sm:$0xff] %v303
    %321 = vst [vmem:[%s319 + $0x8] sm:$0xff] %v316
    %s322 = scalar_lea.vmem %s0, 56
    %v323 = vld [vmem:[%s322] sm:$0xff]
    %v324 = vpack.c.bf16 %v323, %v323
    %v326 = vsel %vm80, %v324, 0
    %328 = vmatpush.bf16.msra.mxu0 0
    %329 = vmatpush.bf16.msra.mxu0 0
    %330 = vmatpush.bf16.msra.mxu0 0
    %331 = vmatpush.bf16.msra.mxu0 0
    %332 = vmatpush.bf16.msra.mxu0 0
    %333 = vmatpush.bf16.msra.mxu0 0
    %334 = vmatpush.bf16.msra.mxu0 %v74
    %335 = vmatpush.bf16.msra.mxu0 %v72
    %336 = vmatmul.bf16.gmra.mxu0 %v326
    %v337 = vpop.f32.mrf.mxu0
    %v338 = vadd.f32 %v56, %v337
    %v339 = vpop.f32.mrf.mxu0
    %340 = vdwg.mxu0
    %341 = vmatpush.bf16.msra.mxu0 0
    %342 = vmatpush.bf16.msra.mxu0 0
    %343 = vmatpush.bf16.msra.mxu0 0
    %344 = vmatpush.bf16.msra.mxu0 0
    %345 = vmatpush.bf16.msra.mxu0 0
    %346 = vmatpush.bf16.msra.mxu0 0
    %347 = vmatpush.bf16.msra.mxu0 %v75
    %348 = vmatpush.bf16.msra.mxu0 %v73
    %349 = vmatmul.bf16.gmra.mxu0 %v326
    %v350 = vpop.f32.mrf.mxu0
    %v351 = vadd.f32 %v57, %v350
    %v352 = vpop.f32.mrf.mxu0
    %353 = vdwg.mxu0
    %s354 = scalar_lea.vmem [#allocation2], 112
    %355 = vst [vmem:[%s354] sm:$0xff] %v338
    %356 = vst [vmem:[%s354 + $0x8] sm:$0xff] %v351
    %v357 = vld [vmem:[#allocation2] sm:$0xff]
    %v358 = vld [vmem:[#allocation2 + $0x8] sm:$0xff]
    %v367 = vunpack.c.l.b16 %v44
    %v368 = vunpack.c.h.b16 %v44
    %v369 = vunpack.c.l.b16 %v45
    %v370 = vunpack.c.h.b16 %v45
    %v371 = vunpack.c.l.b16 %v46
    %v372 = vunpack.c.h.b16 %v46
    %v373 = vunpack.c.l.b16 %v47
    %v374 = vunpack.c.h.b16 %v47
    %v375 = vunpack.c.l.b16 %v48
    %v376 = vunpack.c.h.b16 %v48
    %v377 = vunpack.c.l.b16 %v49
    %v378 = vunpack.c.h.b16 %v49
    %v379 = vunpack.c.l.b16 %v50
    %v380 = vunpack.c.h.b16 %v50
    %v381 = vunpack.c.l.b16 %v51
    %v382 = vunpack.c.h.b16 %v51
    %v383 = vpack.c.b16 %v369, %v367
    %v384 = vpack.c.b16 %v370, %v368
    %v385 = vpack.c.b16 %v373, %v371
    %v386 = vpack.c.b16 %v374, %v372
    %v387 = vpack.c.b16 %v377, %v375
    %v388 = vpack.c.b16 %v378, %v376
    %v389 = vpack.c.b16 %v381, %v379
    %v390 = vpack.c.b16 %v382, %v380
    %vm399 = vcmask 523264
    %v401 = vsel %vm399, 0, 0
    %403 = vmatpush.bf16.msra.mxu0 0
    %404 = vmatpush.bf16.msra.mxu0 0
    %405 = vmatpush.bf16.msra.mxu0 0
    %406 = vmatpush.bf16.msra.mxu0 0
    %407 = vmatpush.bf16.msra.mxu0 %v389
    %408 = vmatpush.bf16.msra.mxu0 %v387
    %409 = vmatpush.bf16.msra.mxu0 %v385
    %410 = vmatpush.bf16.msra.mxu0 %v383
    %411 = vmatmul.bf16.gmra.mxu0 %v401
    %v412 = vpop.f32.mrf.mxu0
    %v413 = vadd.f32 0.0, %v412
    %v414 = vpop.f32.mrf.mxu0
    %415 = vdwg.mxu0
    %416 = vmatpush.bf16.msra.mxu0 0
    %417 = vmatpush.bf16.msra.mxu0 0
    %418 = vmatpush.bf16.msra.mxu0 0
    %419 = vmatpush.bf16.msra.mxu0 0
    %420 = vmatpush.bf16.msra.mxu0 %v390
    %421 = vmatpush.bf16.msra.mxu0 %v388
    %422 = vmatpush.bf16.msra.mxu0 %v386
    %423 = vmatpush.bf16.msra.mxu0 %v384
    %424 = vmatmul.bf16.gmra.mxu0 %v401
    %v425 = vpop.f32.mrf.mxu0
    %v426 = vadd.f32 0.0, %v425
    %v427 = vpop.f32.mrf.mxu0
    %428 = vdwg.mxu0
    %v429 = vadd.f32 %v357, %v413
    %v430 = vadd.f32 %v358, %v426
    %v431 = vxor.u32 %v429, 2147483648
    %v432 = vxor.u32 %v430, 2147483648
    %v433 = vmul.f32 %v431, 1.442695
    %v434 = vpow.pop %v433
    %v435 = vmul.f32 %v432, 1.442695
    %v436 = vpow.pop %v435
    %v437 = vadd.f32 %v434, 1.0
    %v438 = vadd.f32 %v436, 1.0
    %v439 = vrcp.pop %v437
    %v440 = vmul.f32 %v437, %v439
    %v441 = vsub.f32 1.0, %v440
    %v442 = vmul.f32 %v439, %v441
    %v443 = vadd.f32 %v439, %v442
    %vm444 = vweird.f32 %v437
    %vm445 = vweird.f32 %v439
    %vm446 = vmor %vm444, %vm445
    %v447 = vsel %vm446, %v439, %v443
    %v448 = vand.u32 2147483647, %v437
    %vm449 = vcmp.eq.f32.partialorder %v448, 8.507059e+37
    %v450 = vand.u32 %v437, 2147483648
    %v451 = vor.u32 1.1754944e-38, %v450
    %v452 = vsel %vm449, %v451, %v447
    %v453 = vmul.f32 1.0, %v452
    %v454 = vrcp.pop %v438
    %v455 = vmul.f32 %v438, %v454
    %v456 = vsub.f32 1.0, %v455
    %v457 = vmul.f32 %v454, %v456
    %v458 = vadd.f32 %v454, %v457
    %vm459 = vweird.f32 %v438
    %vm460 = vweird.f32 %v454
    %vm461 = vmor %vm459, %vm460
    %v462 = vsel %vm461, %v454, %v458
    %v463 = vand.u32 2147483647, %v438
    %vm464 = vcmp.eq.f32.partialorder %v463, 8.507059e+37
    %v465 = vand.u32 %v438, 2147483648
    %v466 = vor.u32 1.1754944e-38, %v465
    %v467 = vsel %vm464, %v466, %v462
    %v468 = vmul.f32 1.0, %v467
    %v469 = vtanh.pop %v430
    %v470 = vmul.f32 %v453, 0.0
    %472 = vrot.lane.b32.xlu0 %v469, 64
    %v473 = vpop.permute.xlu0 %472
    %v475 = vmul.f32 %v453, %v473
    %477 = vrot.lane.b32.xlu0 %v475, 64
    %v478 = vpop.permute.xlu0 %477
    %v480 = vadd.f32 %v470, %v478
    %v481 = vtanh.pop %v480
    %483 = vrot.lane.b32.xlu0 %v481, 64
    %v484 = vpop.permute.xlu0 %483
    %v486 = vmul.f32 %v468, %v484
    %v487 = vld [vmem:[%s144] sm:$0xff]
    %v488 = vld [vmem:[%s144 + $0x8] sm:$0xff]
    %v489 = vpack.c.bf16 %v486, %v486
    %v491 = vsel %vm399, %v489, 0
    %493 = vmatpush.bf16.msra.mxu0 0
    %494 = vmatpush.bf16.msra.mxu0 0
    %495 = vmatpush.bf16.msra.mxu0 0
    %496 = vmatpush.bf16.msra.mxu0 0
    %497 = vmatpush.bf16.msra.mxu0 %v389
    %498 = vmatpush.bf16.msra.mxu0 %v387
    %499 = vmatpush.bf16.msra.mxu0 %v385
    %500 = vmatpush.bf16.msra.mxu0 %v383
    %501 = vmatmul.bf16.gmra.mxu0 %v491
    %v502 = vpop.f32.mrf.mxu0
    %v503 = vadd.f32 0.0, %v502
    %v504 = vpop.f32.mrf.mxu0
    %505 = vdwg.mxu0
    %506 = vmatpush.bf16.msra.mxu0 0
    %507 = vmatpush.bf16.msra.mxu0 0
    %508 = vmatpush.bf16.msra.mxu0 0
    %509 = vmatpush.bf16.msra.mxu0 0
    %510 = vmatpush.bf16.msra.mxu0 %v390
    %511 = vmatpush.bf16.msra.mxu0 %v388
    %512 = vmatpush.bf16.msra.mxu0 %v386
    %513 = vmatpush.bf16.msra.mxu0 %v384
    %514 = vmatmul.bf16.gmra.mxu0 %v491
    %v515 = vpop.f32.mrf.mxu0
    %v516 = vadd.f32 0.0, %v515
    %v517 = vpop.f32.mrf.mxu0
    %518 = vdwg.mxu0
    %v519 = vadd.f32 %v487, %v503
    %v520 = vadd.f32 %v488, %v516
    %v521 = vxor.u32 %v519, 2147483648
    %v522 = vxor.u32 %v520, 2147483648
    %v523 = vmul.f32 %v521, 1.442695
    %v524 = vpow.pop %v523
    %v525 = vmul.f32 %v522, 1.442695
    %v526 = vpow.pop %v525
    %v527 = vadd.f32 %v524, 1.0
    %v528 = vadd.f32 %v526, 1.0
    %v529 = vrcp.pop %v527
    %v530 = vmul.f32 %v527, %v529
    %v531 = vsub.f32 1.0, %v530
    %v532 = vmul.f32 %v529, %v531
    %v533 = vadd.f32 %v529, %v532
    %vm534 = vweird.f32 %v527
    %vm535 = vweird.f32 %v529
    %vm536 = vmor %vm534, %vm535
    %v537 = vsel %vm536, %v529, %v533
    %v538 = vand.u32 2147483647, %v527
    %vm539 = vcmp.eq.f32.partialorder %v538, 8.507059e+37
    %v540 = vand.u32 %v527, 2147483648
    %v541 = vor.u32 1.1754944e-38, %v540
    %v542 = vsel %vm539, %v541, %v537
    %v543 = vmul.f32 1.0, %v542
    %v544 = vrcp.pop %v528
    %v545 = vmul.f32 %v528, %v544
    %v546 = vsub.f32 1.0, %v545
    %v547 = vmul.f32 %v544, %v546
    %v548 = vadd.f32 %v544, %v547
    %vm549 = vweird.f32 %v528
    %vm550 = vweird.f32 %v544
    %vm551 = vmor %vm549, %vm550
    %v552 = vsel %vm551, %v544, %v548
    %v553 = vand.u32 2147483647, %v528
    %vm554 = vcmp.eq.f32.partialorder %v553, 8.507059e+37
    %v555 = vand.u32 %v528, 2147483648
    %v556 = vor.u32 1.1754944e-38, %v555
    %v557 = vsel %vm554, %v556, %v552
    %v558 = vmul.f32 1.0, %v557
    %v559 = vtanh.pop %v520
    %v560 = vmul.f32 %v543, %v480
    %562 = vrot.lane.b32.xlu0 %v559, 64
    %v563 = vpop.permute.xlu0 %562
    %v565 = vmul.f32 %v543, %v563
    %567 = vrot.lane.b32.xlu0 %v565, 64
    %v568 = vpop.permute.xlu0 %567
    %v570 = vadd.f32 %v560, %v568
    %v571 = vtanh.pop %v570
    %573 = vrot.lane.b32.xlu0 %v571, 64
    %v574 = vpop.permute.xlu0 %573
    %v576 = vmul.f32 %v558, %v574
    %v577 = vld [vmem:[%s179] sm:$0xff]
    %v578 = vld [vmem:[%s179 + $0x8] sm:$0xff]
    %v579 = vpack.c.bf16 %v576, %v576
    %v581 = vsel %vm399, %v579, 0
    %583 = vmatpush.bf16.msra.mxu0 0
    %584 = vmatpush.bf16.msra.mxu0 0
    %585 = vmatpush.bf16.msra.mxu0 0
    %586 = vmatpush.bf16.msra.mxu0 0
    %587 = vmatpush.bf16.msra.mxu0 %v389
    %588 = vmatpush.bf16.msra.mxu0 %v387
    %589 = vmatpush.bf16.msra.mxu0 %v385
    %590 = vmatpush.bf16.msra.mxu0 %v383
    %591 = vmatmul.bf16.gmra.mxu0 %v581
    %v592 = vpop.f32.mrf.mxu0
    %v593 = vadd.f32 0.0, %v592
    %v594 = vpop.f32.mrf.mxu0
    %595 = vdwg.mxu0
    %596 = vmatpush.bf16.msra.mxu0 0
    %597 = vmatpush.bf16.msra.mxu0 0
    %598 = vmatpush.bf16.msra.mxu0 0
    %599 = vmatpush.bf16.msra.mxu0 0
    %600 = vmatpush.bf16.msra.mxu0 %v390
    %601 = vmatpush.bf16.msra.mxu0 %v388
    %602 = vmatpush.bf16.msra.mxu0 %v386
    %603 = vmatpush.bf16.msra.mxu0 %v384
    %604 = vmatmul.bf16.gmra.mxu0 %v581
    %v605 = vpop.f32.mrf.mxu0
    %v606 = vadd.f32 0.0, %v605
    %v607 = vpop.f32.mrf.mxu0
    %608 = vdwg.mxu0
    %v609 = vadd.f32 %v577, %v593
    %v610 = vadd.f32 %v578, %v606
    %v611 = vxor.u32 %v609, 2147483648
    %v612 = vxor.u32 %v610, 2147483648
    %v613 = vmul.f32 %v611, 1.442695
    %v614 = vpow.pop %v613
    %v615 = vmul.f32 %v612, 1.442695
    %v616 = vpow.pop %v615
    %v617 = vadd.f32 %v614, 1.0
    %v618 = vadd.f32 %v616, 1.0
    %v619 = vrcp.pop %v617
    %v620 = vmul.f32 %v617, %v619
    %v621 = vsub.f32 1.0, %v620
    %v622 = vmul.f32 %v619, %v621
    %v623 = vadd.f32 %v619, %v622
    %vm624 = vweird.f32 %v617
    %vm625 = vweird.f32 %v619
    %vm626 = vmor %vm624, %vm625
    %v627 = vsel %vm626, %v619, %v623
    %v628 = vand.u32 2147483647, %v617
    %vm629 = vcmp.eq.f32.partialorder %v628, 8.507059e+37
    %v630 = vand.u32 %v617, 2147483648
    %v631 = vor.u32 1.1754944e-38, %v630
    %v632 = vsel %vm629, %v631, %v627
    %v633 = vmul.f32 1.0, %v632
    %v634 = vrcp.pop %v618
    %v635 = vmul.f32 %v618, %v634
    %v636 = vsub.f32 1.0, %v635
    %v637 = vmul.f32 %v634, %v636
    %v638 = vadd.f32 %v634, %v637
    %vm639 = vweird.f32 %v618
    %vm640 = vweird.f32 %v634
    %vm641 = vmor %vm639, %vm640
    %v642 = vsel %vm641, %v634, %v638
    %v643 = vand.u32 2147483647, %v618
    %vm644 = vcmp.eq.f32.partialorder %v643, 8.507059e+37
    %v645 = vand.u32 %v618, 2147483648
    %v646 = vor.u32 1.1754944e-38, %v645
    %v647 = vsel %vm644, %v646, %v642
    %v648 = vmul.f32 1.0, %v647
    %v649 = vtanh.pop %v610
    %v650 = vmul.f32 %v633, %v570
    %652 = vrot.lane.b32.xlu0 %v649, 64
    %v653 = vpop.permute.xlu0 %652
    %v655 = vmul.f32 %v633, %v653
    %657 = vrot.lane.b32.xlu0 %v655, 64
    %v658 = vpop.permute.xlu0 %657
    %v660 = vadd.f32 %v650, %v658
    %v661 = vtanh.pop %v660
    %663 = vrot.lane.b32.xlu0 %v661, 64
    %v664 = vpop.permute.xlu0 %663
    %v666 = vmul.f32 %v648, %v664
    %v667 = vld [vmem:[%s214] sm:$0xff]
    %v668 = vld [vmem:[%s214 + $0x8] sm:$0xff]
    %v669 = vpack.c.bf16 %v666, %v666
    %v671 = vsel %vm399, %v669, 0
    %673 = vmatpush.bf16.msra.mxu0 0
    %674 = vmatpush.bf16.msra.mxu0 0
    %675 = vmatpush.bf16.msra.mxu0 0
    %676 = vmatpush.bf16.msra.mxu0 0
    %677 = vmatpush.bf16.msra.mxu0 %v389
    %678 = vmatpush.bf16.msra.mxu0 %v387
    %679 = vmatpush.bf16.msra.mxu0 %v385
    %680 = vmatpush.bf16.msra.mxu0 %v383
    %681 = vmatmul.bf16.gmra.mxu0 %v671
    %v682 = vpop.f32.mrf.mxu0
    %v683 = vadd.f32 0.0, %v682
    %v684 = vpop.f32.mrf.mxu0
    %685 = vdwg.mxu0
    %686 = vmatpush.bf16.msra.mxu0 0
    %687 = vmatpush.bf16.msra.mxu0 0
    %688 = vmatpush.bf16.msra.mxu0 0
    %689 = vmatpush.bf16.msra.mxu0 0
    %690 = vmatpush.bf16.msra.mxu0 %v390
    %691 = vmatpush.bf16.msra.mxu0 %v388
    %692 = vmatpush.bf16.msra.mxu0 %v386
    %693 = vmatpush.bf16.msra.mxu0 %v384
    %694 = vmatmul.bf16.gmra.mxu0 %v671
    %v695 = vpop.f32.mrf.mxu0
    %v696 = vadd.f32 0.0, %v695
    %v697 = vpop.f32.mrf.mxu0
    %698 = vdwg.mxu0
    %v699 = vadd.f32 %v667, %v683
    %v700 = vadd.f32 %v668, %v696
    %v701 = vxor.u32 %v699, 2147483648
    %v702 = vxor.u32 %v700, 2147483648
    %v703 = vmul.f32 %v701, 1.442695
    %v704 = vpow.pop %v703
    %v705 = vmul.f32 %v702, 1.442695
    %v706 = vpow.pop %v705
    %v707 = vadd.f32 %v704, 1.0
    %v708 = vadd.f32 %v706, 1.0
    %v709 = vrcp.pop %v707
    %v710 = vmul.f32 %v707, %v709
    %v711 = vsub.f32 1.0, %v710
    %v712 = vmul.f32 %v709, %v711
    %v713 = vadd.f32 %v709, %v712
    %vm714 = vweird.f32 %v707
    %vm715 = vweird.f32 %v709
    %vm716 = vmor %vm714, %vm715
    %v717 = vsel %vm716, %v709, %v713
    %v718 = vand.u32 2147483647, %v707
    %vm719 = vcmp.eq.f32.partialorder %v718, 8.507059e+37
    %v720 = vand.u32 %v707, 2147483648
    %v721 = vor.u32 1.1754944e-38, %v720
    %v722 = vsel %vm719, %v721, %v717
    %v723 = vmul.f32 1.0, %v722
    %v724 = vrcp.pop %v708
    %v725 = vmul.f32 %v708, %v724
    %v726 = vsub.f32 1.0, %v725
    %v727 = vmul.f32 %v724, %v726
    %v728 = vadd.f32 %v724, %v727
    %vm729 = vweird.f32 %v708
    %vm730 = vweird.f32 %v724
    %vm731 = vmor %vm729, %vm730
    %v732 = vsel %vm731, %v724, %v728
    %v733 = vand.u32 2147483647, %v708
    %vm734 = vcmp.eq.f32.partialorder %v733, 8.507059e+37
    %v735 = vand.u32 %v708, 2147483648
    %v736 = vor.u32 1.1754944e-38, %v735
    %v737 = vsel %vm734, %v736, %v732
    %v738 = vmul.f32 1.0, %v737
    %v739 = vtanh.pop %v700
    %v740 = vmul.f32 %v723, %v660
    %742 = vrot.lane.b32.xlu0 %v739, 64
    %v743 = vpop.permute.xlu0 %742
    %v745 = vmul.f32 %v723, %v743
    %747 = vrot.lane.b32.xlu0 %v745, 64
    %v748 = vpop.permute.xlu0 %747
    %v750 = vadd.f32 %v740, %v748
    %v751 = vtanh.pop %v750
    %753 = vrot.lane.b32.xlu0 %v751, 64
    %v754 = vpop.permute.xlu0 %753
    %v756 = vmul.f32 %v738, %v754
    %v757 = vld [vmem:[%s249] sm:$0xff]
    %v758 = vld [vmem:[%s249 + $0x8] sm:$0xff]
    %v759 = vpack.c.bf16 %v756, %v756
    %v761 = vsel %vm399, %v759, 0
    %763 = vmatpush.bf16.msra.mxu0 0
    %764 = vmatpush.bf16.msra.mxu0 0
    %765 = vmatpush.bf16.msra.mxu0 0
    %766 = vmatpush.bf16.msra.mxu0 0
    %767 = vmatpush.bf16.msra.mxu0 %v389
    %768 = vmatpush.bf16.msra.mxu0 %v387
    %769 = vmatpush.bf16.msra.mxu0 %v385
    %770 = vmatpush.bf16.msra.mxu0 %v383
    %771 = vmatmul.bf16.gmra.mxu0 %v761
    %v772 = vpop.f32.mrf.mxu0
    %v773 = vadd.f32 0.0, %v772
    %v774 = vpop.f32.mrf.mxu0
    %775 = vdwg.mxu0
    %776 = vmatpush.bf16.msra.mxu0 0
    %777 = vmatpush.bf16.msra.mxu0 0
    %778 = vmatpush.bf16.msra.mxu0 0
    %779 = vmatpush.bf16.msra.mxu0 0
    %780 = vmatpush.bf16.msra.mxu0 %v390
    %781 = vmatpush.bf16.msra.mxu0 %v388
    %782 = vmatpush.bf16.msra.mxu0 %v386
    %783 = vmatpush.bf16.msra.mxu0 %v384
    %784 = vmatmul.bf16.gmra.mxu0 %v761
    %v785 = vpop.f32.mrf.mxu0
    %v786 = vadd.f32 0.0, %v785
    %v787 = vpop.f32.mrf.mxu0
    %788 = vdwg.mxu0
    %v789 = vadd.f32 %v757, %v773
    %v790 = vadd.f32 %v758, %v786
    %v791 = vxor.u32 %v789, 2147483648
    %v792 = vxor.u32 %v790, 2147483648
    %v793 = vmul.f32 %v791, 1.442695
    %v794 = vpow.pop %v793
    %v795 = vmul.f32 %v792, 1.442695
    %v796 = vpow.pop %v795
    %v797 = vadd.f32 %v794, 1.0
    %v798 = vadd.f32 %v796, 1.0
    %v799 = vrcp.pop %v797
    %v800 = vmul.f32 %v797, %v799
    %v801 = vsub.f32 1.0, %v800
    %v802 = vmul.f32 %v799, %v801
    %v803 = vadd.f32 %v799, %v802
    %vm804 = vweird.f32 %v797
    %vm805 = vweird.f32 %v799
    %vm806 = vmor %vm804, %vm805
    %v807 = vsel %vm806, %v799, %v803
    %v808 = vand.u32 2147483647, %v797
    %vm809 = vcmp.eq.f32.partialorder %v808, 8.507059e+37
    %v810 = vand.u32 %v797, 2147483648
    %v811 = vor.u32 1.1754944e-38, %v810
    %v812 = vsel %vm809, %v811, %v807
    %v813 = vmul.f32 1.0, %v812
    %v814 = vrcp.pop %v798
    %v815 = vmul.f32 %v798, %v814
    %v816 = vsub.f32 1.0, %v815
    %v817 = vmul.f32 %v814, %v816
    %v818 = vadd.f32 %v814, %v817
    %vm819 = vweird.f32 %v798
    %vm820 = vweird.f32 %v814
    %vm821 = vmor %vm819, %vm820
    %v822 = vsel %vm821, %v814, %v818
    %v823 = vand.u32 2147483647, %v798
    %vm824 = vcmp.eq.f32.partialorder %v823, 8.507059e+37
    %v825 = vand.u32 %v798, 2147483648
    %v826 = vor.u32 1.1754944e-38, %v825
    %v827 = vsel %vm824, %v826, %v822
    %v828 = vmul.f32 1.0, %v827
    %v829 = vtanh.pop %v790
    %v830 = vmul.f32 %v813, %v750
    %832 = vrot.lane.b32.xlu0 %v829, 64
    %v833 = vpop.permute.xlu0 %832
    %v835 = vmul.f32 %v813, %v833
    %837 = vrot.lane.b32.xlu0 %v835, 64
    %v838 = vpop.permute.xlu0 %837
    %v840 = vadd.f32 %v830, %v838
    %v841 = vtanh.pop %v840
    %843 = vrot.lane.b32.xlu0 %v841, 64
    %v844 = vpop.permute.xlu0 %843
    %v846 = vmul.f32 %v828, %v844
    %v847 = vld [vmem:[%s284] sm:$0xff]
    %v848 = vld [vmem:[%s284 + $0x8] sm:$0xff]
    %v849 = vpack.c.bf16 %v846, %v846
    %v851 = vsel %vm399, %v849, 0
    %853 = vmatpush.bf16.msra.mxu0 0
    %854 = vmatpush.bf16.msra.mxu0 0
    %855 = vmatpush.bf16.msra.mxu0 0
    %856 = vmatpush.bf16.msra.mxu0 0
    %857 = vmatpush.bf16.msra.mxu0 %v389
    %858 = vmatpush.bf16.msra.mxu0 %v387
    %859 = vmatpush.bf16.msra.mxu0 %v385
    %860 = vmatpush.bf16.msra.mxu0 %v383
    %861 = vmatmul.bf16.gmra.mxu0 %v851
    %v862 = vpop.f32.mrf.mxu0
    %v863 = vadd.f32 0.0, %v862
    %v864 = vpop.f32.mrf.mxu0
    %865 = vdwg.mxu0
    %866 = vmatpush.bf16.msra.mxu0 0
    %867 = vmatpush.bf16.msra.mxu0 0
    %868 = vmatpush.bf16.msra.mxu0 0
    %869 = vmatpush.bf16.msra.mxu0 0
    %870 = vmatpush.bf16.msra.mxu0 %v390
    %871 = vmatpush.bf16.msra.mxu0 %v388
    %872 = vmatpush.bf16.msra.mxu0 %v386
    %873 = vmatpush.bf16.msra.mxu0 %v384
    %874 = vmatmul.bf16.gmra.mxu0 %v851
    %v875 = vpop.f32.mrf.mxu0
    %v876 = vadd.f32 0.0, %v875
    %v877 = vpop.f32.mrf.mxu0
    %878 = vdwg.mxu0
    %v879 = vadd.f32 %v847, %v863
    %v880 = vadd.f32 %v848, %v876
    %v881 = vxor.u32 %v879, 2147483648
    %v882 = vxor.u32 %v880, 2147483648
    %v883 = vmul.f32 %v881, 1.442695
    %v884 = vpow.pop %v883
    %v885 = vmul.f32 %v882, 1.442695
    %v886 = vpow.pop %v885
    %v887 = vadd.f32 %v884, 1.0
    %v888 = vadd.f32 %v886, 1.0
    %v889 = vrcp.pop %v887
    %v890 = vmul.f32 %v887, %v889
    %v891 = vsub.f32 1.0, %v890
    %v892 = vmul.f32 %v889, %v891
    %v893 = vadd.f32 %v889, %v892
    %vm894 = vweird.f32 %v887
    %vm895 = vweird.f32 %v889
    %vm896 = vmor %vm894, %vm895
    %v897 = vsel %vm896, %v889, %v893
    %v898 = vand.u32 2147483647, %v887
    %vm899 = vcmp.eq.f32.partialorder %v898, 8.507059e+37
    %v900 = vand.u32 %v887, 2147483648
    %v901 = vor.u32 1.1754944e-38, %v900
    %v902 = vsel %vm899, %v901, %v897
    %v903 = vmul.f32 1.0, %v902
    %v904 = vrcp.pop %v888
    %v905 = vmul.f32 %v888, %v904
    %v906 = vsub.f32 1.0, %v905
    %v907 = vmul.f32 %v904, %v906
    %v908 = vadd.f32 %v904, %v907
    %vm909 = vweird.f32 %v888
    %vm910 = vweird.f32 %v904
    %vm911 = vmor %vm909, %vm910
    %v912 = vsel %vm911, %v904, %v908
    %v913 = vand.u32 2147483647, %v888
    %vm914 = vcmp.eq.f32.partialorder %v913, 8.507059e+37
    %v915 = vand.u32 %v888, 2147483648
    %v916 = vor.u32 1.1754944e-38, %v915
    %v917 = vsel %vm914, %v916, %v912
    %v918 = vmul.f32 1.0, %v917
    %v919 = vtanh.pop %v880
    %v920 = vmul.f32 %v903, %v840
    %922 = vrot.lane.b32.xlu0 %v919, 64
    %v923 = vpop.permute.xlu0 %922
    %v925 = vmul.f32 %v903, %v923
    %927 = vrot.lane.b32.xlu0 %v925, 64
    %v928 = vpop.permute.xlu0 %927
    %v930 = vadd.f32 %v920, %v928
    %v931 = vtanh.pop %v930
    %933 = vrot.lane.b32.xlu0 %v931, 64
    %v934 = vpop.permute.xlu0 %933
    %v936 = vmul.f32 %v918, %v934
    %v937 = vld [vmem:[%s319] sm:$0xff]
    %v938 = vld [vmem:[%s319 + $0x8] sm:$0xff]
    %v939 = vpack.c.bf16 %v936, %v936
    %v941 = vsel %vm399, %v939, 0
    %943 = vmatpush.bf16.msra.mxu0 0
    %944 = vmatpush.bf16.msra.mxu0 0
    %945 = vmatpush.bf16.msra.mxu0 0
    %946 = vmatpush.bf16.msra.mxu0 0
    %947 = vmatpush.bf16.msra.mxu0 %v389
    %948 = vmatpush.bf16.msra.mxu0 %v387
    %949 = vmatpush.bf16.msra.mxu0 %v385
    %950 = vmatpush.bf16.msra.mxu0 %v383
    %951 = vmatmul.bf16.gmra.mxu0 %v941
    %v952 = vpop.f32.mrf.mxu0
    %v953 = vadd.f32 0.0, %v952
    %v954 = vpop.f32.mrf.mxu0
    %955 = vdwg.mxu0
    %956 = vmatpush.bf16.msra.mxu0 0
    %957 = vmatpush.bf16.msra.mxu0 0
    %958 = vmatpush.bf16.msra.mxu0 0
    %959 = vmatpush.bf16.msra.mxu0 0
    %960 = vmatpush.bf16.msra.mxu0 %v390
    %961 = vmatpush.bf16.msra.mxu0 %v388
    %962 = vmatpush.bf16.msra.mxu0 %v386
    %963 = vmatpush.bf16.msra.mxu0 %v384
    %964 = vmatmul.bf16.gmra.mxu0 %v941
    %v965 = vpop.f32.mrf.mxu0
    %v966 = vadd.f32 0.0, %v965
    %v967 = vpop.f32.mrf.mxu0
    %968 = vdwg.mxu0
    %v969 = vadd.f32 %v937, %v953
    %v970 = vadd.f32 %v938, %v966
    %v971 = vxor.u32 %v969, 2147483648
    %v972 = vxor.u32 %v970, 2147483648
    %v973 = vmul.f32 %v971, 1.442695
    %v974 = vpow.pop %v973
    %v975 = vmul.f32 %v972, 1.442695
    %v976 = vpow.pop %v975
    %v977 = vadd.f32 %v974, 1.0
    %v978 = vadd.f32 %v976, 1.0
    %v979 = vrcp.pop %v977
    %v980 = vmul.f32 %v977, %v979
    %v981 = vsub.f32 1.0, %v980
    %v982 = vmul.f32 %v979, %v981
    %v983 = vadd.f32 %v979, %v982
    %vm984 = vweird.f32 %v977
    %vm985 = vweird.f32 %v979
    %vm986 = vmor %vm984, %vm985
    %v987 = vsel %vm986, %v979, %v983
    %v988 = vand.u32 2147483647, %v977
    %vm989 = vcmp.eq.f32.partialorder %v988, 8.507059e+37
    %v990 = vand.u32 %v977, 2147483648
    %v991 = vor.u32 1.1754944e-38, %v990
    %v992 = vsel %vm989, %v991, %v987
    %v993 = vmul.f32 1.0, %v992
    %v994 = vrcp.pop %v978
    %v995 = vmul.f32 %v978, %v994
    %v996 = vsub.f32 1.0, %v995
    %v997 = vmul.f32 %v994, %v996
    %v998 = vadd.f32 %v994, %v997
    %vm999 = vweird.f32 %v978
    %vm1000 = vweird.f32 %v994
    %vm1001 = vmor %vm999, %vm1000
    %v1002 = vsel %vm1001, %v994, %v998
    %v1003 = vand.u32 2147483647, %v978
    %vm1004 = vcmp.eq.f32.partialorder %v1003, 8.507059e+37
    %v1005 = vand.u32 %v978, 2147483648
    %v1006 = vor.u32 1.1754944e-38, %v1005
    %v1007 = vsel %vm1004, %v1006, %v1002
    %v1008 = vmul.f32 1.0, %v1007
    %v1009 = vtanh.pop %v970
    %v1010 = vmul.f32 %v993, %v930
    %1012 = vrot.lane.b32.xlu0 %v1009, 64
    %v1013 = vpop.permute.xlu0 %1012
    %v1015 = vmul.f32 %v993, %v1013
    %1017 = vrot.lane.b32.xlu0 %v1015, 64
    %v1018 = vpop.permute.xlu0 %1017
    %v1020 = vadd.f32 %v1010, %v1018
    %v1021 = vtanh.pop %v1020
    %1023 = vrot.lane.b32.xlu0 %v1021, 64
    %v1024 = vpop.permute.xlu0 %1023
    %v1026 = vmul.f32 %v1008, %v1024
    %v1027 = vld [vmem:[%s354] sm:$0xff]
    %v1028 = vld [vmem:[%s354 + $0x8] sm:$0xff]
    %v1029 = vpack.c.bf16 %v1026, %v1026
    %v1031 = vsel %vm399, %v1029, 0
    %1033 = vmatpush.bf16.msra.mxu0 0
    %1034 = vmatpush.bf16.msra.mxu0 0
    %1035 = vmatpush.bf16.msra.mxu0 0
    %1036 = vmatpush.bf16.msra.mxu0 0
    %1037 = vmatpush.bf16.msra.mxu0 %v389
    %1038 = vmatpush.bf16.msra.mxu0 %v387
    %1039 = vmatpush.bf16.msra.mxu0 %v385
    %1040 = vmatpush.bf16.msra.mxu0 %v383
    %1041 = vmatmul.bf16.gmra.mxu0 %v1031
    %v1042 = vpop.f32.mrf.mxu0
    %v1043 = vadd.f32 0.0, %v1042
    %v1044 = vpop.f32.mrf.mxu0
    %1045 = vdwg.mxu0
    %1046 = vmatpush.bf16.msra.mxu0 0
    %1047 = vmatpush.bf16.msra.mxu0 0
    %1048 = vmatpush.bf16.msra.mxu0 0
    %1049 = vmatpush.bf16.msra.mxu0 0
    %1050 = vmatpush.bf16.msra.mxu0 %v390
    %1051 = vmatpush.bf16.msra.mxu0 %v388
    %1052 = vmatpush.bf16.msra.mxu0 %v386
    %1053 = vmatpush.bf16.msra.mxu0 %v384
    %1054 = vmatmul.bf16.gmra.mxu0 %v1031
    %v1055 = vpop.f32.mrf.mxu0
    %v1056 = vadd.f32 0.0, %v1055
    %v1057 = vpop.f32.mrf.mxu0
    %1058 = vdwg.mxu0
    %v1059 = vadd.f32 %v1027, %v1043
    %v1060 = vadd.f32 %v1028, %v1056
    %v1061 = vxor.u32 %v1059, 2147483648
    %v1062 = vxor.u32 %v1060, 2147483648
    %v1063 = vmul.f32 %v1061, 1.442695
    %v1064 = vpow.pop %v1063
    %v1065 = vmul.f32 %v1062, 1.442695
    %v1066 = vpow.pop %v1065
    %v1067 = vadd.f32 %v1064, 1.0
    %v1068 = vadd.f32 %v1066, 1.0
    %v1069 = vrcp.pop %v1067
    %v1070 = vmul.f32 %v1067, %v1069
    %v1071 = vsub.f32 1.0, %v1070
    %v1072 = vmul.f32 %v1069, %v1071
    %v1073 = vadd.f32 %v1069, %v1072
    %vm1074 = vweird.f32 %v1067
    %vm1075 = vweird.f32 %v1069
    %vm1076 = vmor %vm1074, %vm1075
    %v1077 = vsel %vm1076, %v1069, %v1073
    %v1078 = vand.u32 2147483647, %v1067
    %vm1079 = vcmp.eq.f32.partialorder %v1078, 8.507059e+37
    %v1080 = vand.u32 %v1067, 2147483648
    %v1081 = vor.u32 1.1754944e-38, %v1080
    %v1082 = vsel %vm1079, %v1081, %v1077
    %v1083 = vmul.f32 1.0, %v1082
    %v1084 = vrcp.pop %v1068
    %v1085 = vmul.f32 %v1068, %v1084
    %v1086 = vsub.f32 1.0, %v1085
    %v1087 = vmul.f32 %v1084, %v1086
    %v1088 = vadd.f32 %v1084, %v1087
    %vm1089 = vweird.f32 %v1068
    %vm1090 = vweird.f32 %v1084
    %vm1091 = vmor %vm1089, %vm1090
    %v1092 = vsel %vm1091, %v1084, %v1088
    %v1093 = vand.u32 2147483647, %v1068
    %vm1094 = vcmp.eq.f32.partialorder %v1093, 8.507059e+37
    %v1095 = vand.u32 %v1068, 2147483648
    %v1096 = vor.u32 1.1754944e-38, %v1095
    %v1097 = vsel %vm1094, %v1096, %v1092
    %v1098 = vmul.f32 1.0, %v1097
    %v1099 = vtanh.pop %v1060
    %v1100 = vmul.f32 %v1083, %v1020
    %1102 = vrot.lane.b32.xlu0 %v1099, 64
    %v1103 = vpop.permute.xlu0 %1102
    %v1105 = vmul.f32 %v1083, %v1103
    %1107 = vrot.lane.b32.xlu0 %v1105, 64
    %v1108 = vpop.permute.xlu0 %1107
    %v1110 = vadd.f32 %v1100, %v1108
    %v1111 = vtanh.pop %v1110
    %1113 = vrot.lane.b32.xlu0 %v1111, 64
    %v1114 = vpop.permute.xlu0 %1113
    %v1116 = vmul.f32 %v1098, %v1114
    %v1117 = vpack.c.bf16 %v1116, %v1116
    %v1118 = vld [vmem:[#allocation3] sm:$0xf]
    %v1119 = vld [vmem:[#allocation3 + $0x4] sm:$0xf]
    %v1120 = vld [vmem:[#allocation3 + $0x8] sm:$0xf]
    %v1121 = vld [vmem:[#allocation3 + $0xc] sm:$0xf]
    %v1122 = vld [vmem:[#allocation3 + $0x10] sm:$0xf]
    %v1123 = vld [vmem:[#allocation3 + $0x14] sm:$0xf]
    %v1124 = vld [vmem:[#allocation3 + $0x18] sm:$0xf]
    %v1125 = vld [vmem:[#allocation3 + $0x1c] sm:$0xf]
    %v1126 = vld [vmem:[%s5] sm:$0x1]
    %v1128 = vperm.slane %v1126, 0
    %v1138 = vunpack.c.l.b16 %v1118
    %v1139 = vunpack.c.l.b16 %v1119
    %v1140 = vunpack.c.l.b16 %v1120
    %v1141 = vunpack.c.l.b16 %v1121
    %v1142 = vunpack.c.l.b16 %v1122
    %v1143 = vunpack.c.l.b16 %v1123
    %v1144 = vunpack.c.l.b16 %v1124
    %v1145 = vunpack.c.l.b16 %v1125
    %v1146 = vpack.c.b16 %v1139, %v1138
    %v1147 = vpack.c.b16 %v1141, %v1140
    %v1148 = vpack.c.b16 %v1143, %v1142
    %v1149 = vpack.c.b16 %v1145, %v1144
    %v1155 = vsel %vm399, %v1117, 0
    %1157 = vmatpush.bf16.msra.mxu0 0
    %1158 = vmatpush.bf16.msra.mxu0 0
    %1159 = vmatpush.bf16.msra.mxu0 0
    %1160 = vmatpush.bf16.msra.mxu0 0
    %1161 = vmatpush.bf16.msra.mxu0 %v1149
    %1162 = vmatpush.bf16.msra.mxu0 %v1148
    %1163 = vmatpush.bf16.msra.mxu0 %v1147
    %1164 = vmatpush.bf16.msra.mxu0 %v1146
    %1165 = vmatmul.bf16.gmra.mxu0 %v1155
    %v1166 = vpop.f32.mrf.mxu0
    %v1167 = vadd.f32 %v1128, %v1166
    %v1168 = vpop.f32.mrf.mxu0
    %1169 = vdwg.mxu0
    %1170 = vst [vmem:[%s6] sm:$0xff] %v1167
    // Predicated region
    $region30: #{rnn_forward.1} parent=1 // pred_check
      _
    $region31: #{rnn_forward.1} parent=1 // pred_check_branch
      %1172 = sbr.rel (0) target = $region33
    $region32: #{rnn_forward.1} parent=1 // pred_region
      _
    $region33: #{rnn_forward.1} parent=1 // pred_fallthru
      _
    // Predicated region
    $region34: #{rnn_forward.1} parent=1 // pred_check
      _
    $region35: #{rnn_forward.1} parent=1 // pred_check_branch
      %1174 = sbr.rel (0) target = $region37
    $region36: #{rnn_forward.1} parent=1 // pred_region
      _
    $region37: #{rnn_forward.1} parent=1 // pred_fallthru
      _
    %1175 = vsyncpa [#allocation4], 1

</llo_original>
